<compile_context>
chip_gen: v6e
topology: v6e:2x2x1
jax: 0.10.0
libtpu: 0.0.40
codegen_flags: <defaults>
</compile_context>

<pallas_src>
import math
from functools import partial

import jax
import jax.numpy as jnp
from jax import lax
from jax.experimental import pallas as pl
from jax.experimental.pallas import tpu as pltpu


# ----------------------------------------------------------------------------
# Fused kernel: grid = (batch, layer)
#   layer 0 also applies the embed Linear:  p = x + Linear(x)
#   every layer:  x1 = MHA(q(p), k(p), v(p)) + p ;  p = fc2(fc1(x1)) + x1
# The output block (same index for all layer steps of a batch) is the
# resident activation accumulator.
# ----------------------------------------------------------------------------
def _block_kernel(num_heads,
                  x_ref, wlin_ref, blin_ref,
                  wqkv_ref, bqkv_ref, wout_ref, bout_ref, wffn_ref,
                  o_ref, attn_sc):
    l = pl.program_id(1)
    S, C = o_ref.shape
    H = num_heads
    D = C // H

    # embed (once per batch, at the first layer iteration)
    @pl.when(l == 0)
    def _():
        x = x_ref[...].astype(jnp.float32)
        o_ref[...] = (x
                      + jnp.dot(x, wlin_ref[...],
                                preferred_element_type=jnp.float32)
                      + blin_ref[...])

    p = o_ref[...]                                               # (S, C) f32

    # fused q/k/v projection (outer Linear folded into in_proj, q pre-scaled)
    qkv = (jnp.dot(p, wqkv_ref[...], preferred_element_type=jnp.float32)
           + bqkv_ref[...])                                      # (S, 3C)

    trans_b = (((1,), (1,)), ((), ()))        # contract last dims: q @ k.T

    for h in range(H):
        qh = qkv[:, h * D:(h + 1) * D]                           # (S, D)
        kh = qkv[:, C + h * D:C + (h + 1) * D]
        vh = qkv[:, 2 * C + h * D:2 * C + (h + 1) * D]
        s = lax.dot_general(qh, kh, trans_b,
                            preferred_element_type=jnp.float32)  # (S, S)
        s = s - jnp.max(s, axis=-1, keepdims=True)
        e = jnp.exp(s)
        pr = e * pl.reciprocal(jnp.sum(e, axis=-1, keepdims=True), approx=True)
        attn_sc[:, h * D:(h + 1) * D] = jnp.dot(
            pr, vh, preferred_element_type=jnp.float32)

    # out-projection (+bias) + residual, then folded (fc2∘fc1) + residual
    x1 = (jnp.dot(attn_sc[...], wout_ref[...],
                  preferred_element_type=jnp.float32)
          + bout_ref[...] + p)
    o_ref[...] = x1 + jnp.dot(x1, wffn_ref[...],
                              preferred_element_type=jnp.float32)


# ----------------------------------------------------------------------------
# Wrapper: weight folding (done once, in plain JAX) + fused pallas_call
# ----------------------------------------------------------------------------
def _fold_params(params, C, num_heads):
    scale = 1.0 / math.sqrt(C // num_heads)
    wlin_t = params["linear_w"].T                                # (C, C)
    blin = params["linear_b"].reshape(1, C)

    wqkv_t, bqkv, wout_t, bout, wffn_t = [], [], [], [], []
    for (wq, wk, wv, w_in, b_in, w_out, b_out, w1, w2) in params["layers"]:
        wq_eff = (w_in[0:C] @ wq) * scale                        # (C, C)
        wk_eff = w_in[C:2 * C] @ wk
        wv_eff = w_in[2 * C:3 * C] @ wv
        wqkv_t.append(jnp.concatenate(
            [wq_eff.T, wk_eff.T, wv_eff.T], axis=1))             # (C, 3C)
        bqkv.append(jnp.concatenate(
            [b_in[0] * scale, b_in[1], b_in[2]]).reshape(1, 3 * C))
        wout_t.append(w_out.T)                                   # (C, C)
        bout.append(b_out.reshape(1, C))
        wffn_t.append((w2 @ w1).T)                               # (C, C)

    return (wlin_t, blin,
            jnp.stack(wqkv_t), jnp.stack(bqkv),
            jnp.stack(wout_t), jnp.stack(bout), jnp.stack(wffn_t))


def transformer_block(x, params, num_heads):
    B, C, W, H = x.shape
    S = W * H
    L = len(params["layers"])

    # p = x.flatten(2).unsqueeze(0).transpose(0,3).squeeze(3)  -> here (B,S,C)
    p = jnp.transpose(x.reshape(B, C, S), (0, 2, 1))

    (wlin_t, blin, wqkv_t, bqkv,
     wout_t, bout, wffn_t) = _fold_params(params, C, num_heads)

    out = pl.pallas_call(
        partial(_block_kernel, num_heads),
        out_shape=jax.ShapeDtypeStruct((B, S, C), x.dtype),
        grid=(B, L),
        in_specs=[
            pl.BlockSpec((None, S, C), lambda b, l: (b, 0, 0)),      # x
            pl.BlockSpec((C, C), lambda b, l: (0, 0)),               # wlin_t
            pl.BlockSpec((1, C), lambda b, l: (0, 0)),               # blin
            pl.BlockSpec((None, C, 3 * C), lambda b, l: (l, 0, 0)),  # wqkv_t
            pl.BlockSpec((None, 1, 3 * C), lambda b, l: (l, 0, 0)),  # bqkv
            pl.BlockSpec((None, C, C), lambda b, l: (l, 0, 0)),      # wout_t
            pl.BlockSpec((None, 1, C), lambda b, l: (l, 0, 0)),      # bout
            pl.BlockSpec((None, C, C), lambda b, l: (l, 0, 0)),      # wffn_t
        ],
        out_specs=pl.BlockSpec((None, S, C), lambda b, l: (b, 0, 0)),
        scratch_shapes=[pltpu.VMEM((S, C), jnp.float32)],
        compiler_params=pltpu.CompilerParams(
            dimension_semantics=("parallel", "arbitrary")),
    )(p, wlin_t, blin, wqkv_t, bqkv, wout_t, bout, wffn_t)

    # .unsqueeze(3).transpose(0,3).reshape(b, c2, w, h)
    return jnp.transpose(out, (0, 2, 1)).reshape(B, C, W, H)


# ----------------------------------------------------------------------------
# Pure-JAX reference (unfolded weights) for correctness check
# ----------------------------------------------------------------------------
def reference(x, params, num_heads):
    B, C, W, H = x.shape
    D = C // num_heads
    p = jnp.transpose(x.reshape(B, C, W * H), (0, 2, 1))
    p = p + (p @ params["linear_w"].T + params["linear_b"][0])
    for (wq, wk, wv, w_in, b_in, w_out, b_out, w1, w2) in params["layers"]:
        qp, kp, vp = p @ wq.T, p @ wk.T, p @ wv.T
        Q = qp @ w_in[:C].T + b_in[0]
        K = kp @ w_in[C:2 * C].T + b_in[1]
        V = vp @ w_in[2 * C:].T + b_in[2]
        Qh = Q.reshape(B, -1, num_heads, D).transpose(0, 2, 1, 3)
        Kh = K.reshape(B, -1, num_heads, D).transpose(0, 2, 1, 3)
        Vh = V.reshape(B, -1, num_heads, D).transpose(0, 2, 1, 3)
        s = jnp.einsum('bhqd,bhkd->bhqk', Qh, Kh) / jnp.sqrt(float(D))
        a = jax.nn.softmax(s, axis=-1)
        o = jnp.einsum('bhqk,bhkd->bhqd', a, Vh).transpose(0, 2, 1, 3).reshape(B, -1, C)
        x1 = o @ w_out.T + b_out[0] + p
        p = (x1 @ w1.T) @ w2.T + x1
    return jnp.transpose(p, (0, 2, 1)).reshape(B, C, W, H)


# ----------------------------------------------------------------------------
# Deterministic parameter init (shapes per TransformerBlock.__init__)
# ----------------------------------------------------------------------------
def init_params(key, C, num_layers):
    scale = jnp.float32(0.05)
    keys = jax.random.split(key, 2 + num_layers)
    params = {
        "linear_w": jax.random.normal(keys[0], (C, C), jnp.float32) * scale,
        "linear_b": jax.random.normal(keys[1], (1, C), jnp.float32) * scale,
        "layers": [],
    }
    for i in range(num_layers):
        ks = jax.random.split(keys[2 + i], 9)
        params["layers"].append((
            jax.random.normal(ks[0], (C, C), jnp.float32) * scale,       # q.weight
            jax.random.normal(ks[1], (C, C), jnp.float32) * scale,       # k.weight
            jax.random.normal(ks[2], (C, C), jnp.float32) * scale,       # v.weight
            jax.random.normal(ks[3], (3 * C, C), jnp.float32) * scale,   # ma.in_proj_weight
            jax.random.normal(ks[4], (3, C), jnp.float32) * scale,       # ma.in_proj_bias
            jax.random.normal(ks[5], (C, C), jnp.float32) * scale,       # ma.out_proj.weight
            jax.random.normal(ks[6], (1, C), jnp.float32) * scale,       # ma.out_proj.bias
            jax.random.normal(ks[7], (C, C), jnp.float32) * scale,       # fc1.weight
            jax.random.normal(ks[8], (C, C), jnp.float32) * scale,       # fc2.weight
        ))
    return params


if __name__ == "__main__":
    key = jax.random.PRNGKey(0)
    B, C, W, H = 2, 32, 8, 8          # c1 == c2 == 32 -> conv is None
    num_heads, num_layers = 4, 2

    kx, kp = jax.random.split(key)
    x = jax.random.normal(kx, (B, C, W, H), jnp.float32)
    params = init_params(kp, C, num_layers)

    out = jax.block_until_ready(transformer_block(x, params, num_heads))

    ref = reference(x, params, num_heads)
    assert out.shape == (B, C, W, H)
    assert jnp.allclose(out, ref, rtol=1e-4, atol=1e-4), \
        f"max abs diff {float(jnp.max(jnp.abs(out - ref)))}"

    print("KERNEL_OK")
</pallas_src>

<mosaic_0001>
module attributes {stable_mosaic.version = 11 : i64} {
  func.func @_block_kernel(%arg0: i32, %arg1: i32, %arg2: memref<1x64x32xf32, #tpu.memory_space<vmem>>, %arg3: memref<32x32xf32, #tpu.memory_space<vmem>>, %arg4: memref<1x32xf32, #tpu.memory_space<vmem>>, %arg5: memref<1x32x96xf32, #tpu.memory_space<vmem>>, %arg6: memref<1x1x96xf32, #tpu.memory_space<vmem>>, %arg7: memref<1x32x32xf32, #tpu.memory_space<vmem>>, %arg8: memref<1x1x32xf32, #tpu.memory_space<vmem>>, %arg9: memref<1x32x32xf32, #tpu.memory_space<vmem>>, %arg10: memref<1x64x32xf32, #tpu.memory_space<vmem>>, %arg11: memref<64x32xf32, #tpu.memory_space<vmem>>) attributes {dimension_semantics = [#tpu.dimension_semantics<parallel>, #tpu.dimension_semantics<arbitrary>], iteration_bounds = array<i64: 2, 2>, scalar_prefetch = 0 : i64, scratch_operands = 1 : i64, tpu.core_type = #tpu.core_type<tc>, window_params = [{transform_indices = @transform_0, window_bounds = array<i64: 1, 64, 32>}, {pipeline_mode = #tpu.pipeline_mode<synchronous>, transform_indices = @transform_1, window_bounds = array<i64: 32, 32>}, {pipeline_mode = #tpu.pipeline_mode<synchronous>, transform_indices = @transform_2, window_bounds = array<i64: 1, 32>}, {transform_indices = @transform_3, window_bounds = array<i64: 1, 32, 96>}, {transform_indices = @transform_4, window_bounds = array<i64: 1, 1, 96>}, {transform_indices = @transform_5, window_bounds = array<i64: 1, 32, 32>}, {transform_indices = @transform_6, window_bounds = array<i64: 1, 1, 32>}, {transform_indices = @transform_7, window_bounds = array<i64: 1, 32, 32>}, {transform_indices = @transform_8, window_bounds = array<i64: 1, 64, 32>}]} {
    %c0_i32 = arith.constant 0 : i32
    %0 = arith.cmpi eq, %arg1, %c0_i32 : i32
    %1 = arith.extui %0 : i1 to i32
    %c0_i32_0 = arith.constant 0 : i32
    %2 = arith.cmpi ne, %1, %c0_i32_0 : i32
    scf.if %2 {
      %c0_46 = arith.constant 0 : index
      %c0_47 = arith.constant 0 : index
      %c0_48 = arith.constant 0 : index
      %92 = vector.load %arg2[%c0_46, %c0_47, %c0_48] : memref<1x64x32xf32, #tpu.memory_space<vmem>>, vector<1x64x32xf32>
      %93 = vector.shape_cast %92 : vector<1x64x32xf32> to vector<64x32xf32>
      %c0_49 = arith.constant 0 : index
      %c0_50 = arith.constant 0 : index
      %94 = vector.load %arg3[%c0_49, %c0_50] : memref<32x32xf32, #tpu.memory_space<vmem>>, vector<32x32xf32>
      %cst_51 = arith.constant dense<0.000000e+00> : vector<64x32xf32>
      %95 = tpu.matmul %93, %94, %cst_51 {dimension_numbers = #tpu.dot_dimension_numbers<[1], [0], [0], [1], [0, 0, 1, 1], [], []>} : vector<64x32xf32>, vector<32x32xf32>, vector<64x32xf32> -> vector<64x32xf32>
      %96 = arith.addf %93, %95 : vector<64x32xf32>
      %c0_52 = arith.constant 0 : index
      %c0_53 = arith.constant 0 : index
      %97 = vector.load %arg4[%c0_52, %c0_53] : memref<1x32xf32, #tpu.memory_space<vmem>>, vector<1x32xf32>
      %98 = vector.broadcast %97 : vector<1x32xf32> to vector<64x32xf32>
      %99 = arith.addf %96, %98 : vector<64x32xf32>
      %c0_54 = arith.constant 0 : index
      %c0_55 = arith.constant 0 : index
      %c0_56 = arith.constant 0 : index
      %100 = vector.load %arg10[%c0_54, %c0_55, %c0_56] : memref<1x64x32xf32, #tpu.memory_space<vmem>>, vector<1x64x32xf32>
      %101 = vector.shape_cast %100 : vector<1x64x32xf32> to vector<64x32xf32>
      %102 = vector.shape_cast %99 : vector<64x32xf32> to vector<1x64x32xf32>
      tpu.vector_store %arg10[%c0_54, %c0_55, %c0_56], %102 {strides = array<i32>} : memref<1x64x32xf32, #tpu.memory_space<vmem>>, vector<1x64x32xf32>,
    } else {
    }
    %c0 = arith.constant 0 : index
    %c0_1 = arith.constant 0 : index
    %c0_2 = arith.constant 0 : index
    %3 = vector.load %arg10[%c0, %c0_1, %c0_2] : memref<1x64x32xf32, #tpu.memory_space<vmem>>, vector<1x64x32xf32>
    %4 = vector.shape_cast %3 : vector<1x64x32xf32> to vector<64x32xf32>
    %c0_3 = arith.constant 0 : index
    %c0_4 = arith.constant 0 : index
    %c0_5 = arith.constant 0 : index
    %5 = vector.load %arg5[%c0_3, %c0_4, %c0_5] : memref<1x32x96xf32, #tpu.memory_space<vmem>>, vector<1x32x96xf32>
    %6 = vector.shape_cast %5 : vector<1x32x96xf32> to vector<32x96xf32>
    %cst = arith.constant dense<0.000000e+00> : vector<64x96xf32>
    %7 = tpu.matmul %4, %6, %cst {dimension_numbers = #tpu.dot_dimension_numbers<[1], [0], [0], [1], [0, 0, 1, 1], [], []>} : vector<64x32xf32>, vector<32x96xf32>, vector<64x96xf32> -> vector<64x96xf32>
    %c0_6 = arith.constant 0 : index
    %c0_7 = arith.constant 0 : index
    %c0_8 = arith.constant 0 : index
    %8 = vector.load %arg6[%c0_6, %c0_7, %c0_8] : memref<1x1x96xf32, #tpu.memory_space<vmem>>, vector<1x1x96xf32>
    %9 = vector.shape_cast %8 : vector<1x1x96xf32> to vector<1x96xf32>
    %10 = vector.broadcast %9 : vector<1x96xf32> to vector<64x96xf32>
    %11 = arith.addf %7, %10 : vector<64x96xf32>
    %12 = vector.extract_strided_slice %11 {offsets = [0, 0], sizes = [64, 8], strides = [1, 1]} : vector<64x96xf32> to vector<64x8xf32>
    %13 = vector.extract_strided_slice %11 {offsets = [0, 32], sizes = [64, 8], strides = [1, 1]} : vector<64x96xf32> to vector<64x8xf32>
    %14 = vector.extract_strided_slice %11 {offsets = [0, 64], sizes = [64, 8], strides = [1, 1]} : vector<64x96xf32> to vector<64x8xf32>
    %cst_9 = arith.constant dense<0.000000e+00> : vector<64x64xf32>
    %15 = tpu.matmul %12, %13, %cst_9 {dimension_numbers = #tpu.dot_dimension_numbers<[1], [1], [0], [0], [0, 0, 1, 0], [], []>} : vector<64x8xf32>, vector<64x8xf32>, vector<64x64xf32> -> vector<64x64xf32>
    %cst_10 = arith.constant dense<0xFF800000> : vector<64xf32>
    %16 = vector.multi_reduction <maximumf>, %15, %cst_10 [1] : vector<64x64xf32> to vector<64xf32>
    %17 = vector.shape_cast %16 : vector<64xf32> to vector<64x1xf32>
    %18 = vector.broadcast %17 : vector<64x1xf32> to vector<64x64xf32>
    %19 = arith.subf %15, %18 : vector<64x64xf32>
    %20 = math.exp %19 : vector<64x64xf32>
    %cst_11 = arith.constant dense<0.000000e+00> : vector<64xf32>
    %21 = vector.multi_reduction <add>, %20, %cst_11 [1] : vector<64x64xf32> to vector<64xf32>
    %22 = vector.shape_cast %21 : vector<64xf32> to vector<64x1xf32>
    %23 = tpu.reciprocal %22 {approx = true} : vector<64x1xf32> -> vector<64x1xf32>
    %24 = vector.broadcast %23 : vector<64x1xf32> to vector<64x64xf32>
    %25 = arith.mulf %20, %24 : vector<64x64xf32>
    %cst_12 = arith.constant dense<0.000000e+00> : vector<64x8xf32>
    %26 = tpu.matmul %25, %14, %cst_12 {dimension_numbers = #tpu.dot_dimension_numbers<[1], [0], [0], [1], [0, 0, 1, 1], [], []>} : vector<64x64xf32>, vector<64x8xf32>, vector<64x8xf32> -> vector<64x8xf32>
    %c0_13 = arith.constant 0 : index
    %c0_14 = arith.constant 0 : index
    %27 = vector.load %arg11[%c0_13, %c0_14] : memref<64x32xf32, #tpu.memory_space<vmem>>, vector<64x8xf32>
    tpu.vector_store %arg11[%c0_13, %c0_14], %26 {strides = array<i32>} : memref<64x32xf32, #tpu.memory_space<vmem>>, vector<64x8xf32>,
    %28 = vector.extract_strided_slice %11 {offsets = [0, 8], sizes = [64, 8], strides = [1, 1]} : vector<64x96xf32> to vector<64x8xf32>
    %29 = vector.extract_strided_slice %11 {offsets = [0, 40], sizes = [64, 8], strides = [1, 1]} : vector<64x96xf32> to vector<64x8xf32>
    %30 = vector.extract_strided_slice %11 {offsets = [0, 72], sizes = [64, 8], strides = [1, 1]} : vector<64x96xf32> to vector<64x8xf32>
    %cst_15 = arith.constant dense<0.000000e+00> : vector<64x64xf32>
    %31 = tpu.matmul %28, %29, %cst_15 {dimension_numbers = #tpu.dot_dimension_numbers<[1], [1], [0], [0], [0, 0, 1, 0], [], []>} : vector<64x8xf32>, vector<64x8xf32>, vector<64x64xf32> -> vector<64x64xf32>
    %cst_16 = arith.constant dense<0xFF800000> : vector<64xf32>
    %32 = vector.multi_reduction <maximumf>, %31, %cst_16 [1] : vector<64x64xf32> to vector<64xf32>
    %33 = vector.shape_cast %32 : vector<64xf32> to vector<64x1xf32>
    %34 = vector.broadcast %33 : vector<64x1xf32> to vector<64x64xf32>
    %35 = arith.subf %31, %34 : vector<64x64xf32>
    %36 = math.exp %35 : vector<64x64xf32>
    %cst_17 = arith.constant dense<0.000000e+00> : vector<64xf32>
    %37 = vector.multi_reduction <add>, %36, %cst_17 [1] : vector<64x64xf32> to vector<64xf32>
    %38 = vector.shape_cast %37 : vector<64xf32> to vector<64x1xf32>
    %39 = tpu.reciprocal %38 {approx = true} : vector<64x1xf32> -> vector<64x1xf32>
    %40 = vector.broadcast %39 : vector<64x1xf32> to vector<64x64xf32>
    %41 = arith.mulf %36, %40 : vector<64x64xf32>
    %cst_18 = arith.constant dense<0.000000e+00> : vector<64x8xf32>
    %42 = tpu.matmul %41, %30, %cst_18 {dimension_numbers = #tpu.dot_dimension_numbers<[1], [0], [0], [1], [0, 0, 1, 1], [], []>} : vector<64x64xf32>, vector<64x8xf32>, vector<64x8xf32> -> vector<64x8xf32>
    %c0_19 = arith.constant 0 : index
    %c8 = arith.constant 8 : index
    %43 = vector.load %arg11[%c0_19, %c8] : memref<64x32xf32, #tpu.memory_space<vmem>>, vector<64x8xf32>
    tpu.vector_store %arg11[%c0_19, %c8], %42 {strides = array<i32>} : memref<64x32xf32, #tpu.memory_space<vmem>>, vector<64x8xf32>,
    %44 = vector.extract_strided_slice %11 {offsets = [0, 16], sizes = [64, 8], strides = [1, 1]} : vector<64x96xf32> to vector<64x8xf32>
    %45 = vector.extract_strided_slice %11 {offsets = [0, 48], sizes = [64, 8], strides = [1, 1]} : vector<64x96xf32> to vector<64x8xf32>
    %46 = vector.extract_strided_slice %11 {offsets = [0, 80], sizes = [64, 8], strides = [1, 1]} : vector<64x96xf32> to vector<64x8xf32>
    %cst_20 = arith.constant dense<0.000000e+00> : vector<64x64xf32>
    %47 = tpu.matmul %44, %45, %cst_20 {dimension_numbers = #tpu.dot_dimension_numbers<[1], [1], [0], [0], [0, 0, 1, 0], [], []>} : vector<64x8xf32>, vector<64x8xf32>, vector<64x64xf32> -> vector<64x64xf32>
    %cst_21 = arith.constant dense<0xFF800000> : vector<64xf32>
    %48 = vector.multi_reduction <maximumf>, %47, %cst_21 [1] : vector<64x64xf32> to vector<64xf32>
    %49 = vector.shape_cast %48 : vector<64xf32> to vector<64x1xf32>
    %50 = vector.broadcast %49 : vector<64x1xf32> to vector<64x64xf32>
    %51 = arith.subf %47, %50 : vector<64x64xf32>
    %52 = math.exp %51 : vector<64x64xf32>
    %cst_22 = arith.constant dense<0.000000e+00> : vector<64xf32>
    %53 = vector.multi_reduction <add>, %52, %cst_22 [1] : vector<64x64xf32> to vector<64xf32>
    %54 = vector.shape_cast %53 : vector<64xf32> to vector<64x1xf32>
    %55 = tpu.reciprocal %54 {approx = true} : vector<64x1xf32> -> vector<64x1xf32>
    %56 = vector.broadcast %55 : vector<64x1xf32> to vector<64x64xf32>
    %57 = arith.mulf %52, %56 : vector<64x64xf32>
    %cst_23 = arith.constant dense<0.000000e+00> : vector<64x8xf32>
    %58 = tpu.matmul %57, %46, %cst_23 {dimension_numbers = #tpu.dot_dimension_numbers<[1], [0], [0], [1], [0, 0, 1, 1], [], []>} : vector<64x64xf32>, vector<64x8xf32>, vector<64x8xf32> -> vector<64x8xf32>
    %c0_24 = arith.constant 0 : index
    %c16 = arith.constant 16 : index
    %59 = vector.load %arg11[%c0_24, %c16] : memref<64x32xf32, #tpu.memory_space<vmem>>, vector<64x8xf32>
    tpu.vector_store %arg11[%c0_24, %c16], %58 {strides = array<i32>} : memref<64x32xf32, #tpu.memory_space<vmem>>, vector<64x8xf32>,
    %60 = vector.extract_strided_slice %11 {offsets = [0, 24], sizes = [64, 8], strides = [1, 1]} : vector<64x96xf32> to vector<64x8xf32>
    %61 = vector.extract_strided_slice %11 {offsets = [0, 56], sizes = [64, 8], strides = [1, 1]} : vector<64x96xf32> to vector<64x8xf32>
    %62 = vector.extract_strided_slice %11 {offsets = [0, 88], sizes = [64, 8], strides = [1, 1]} : vector<64x96xf32> to vector<64x8xf32>
    %cst_25 = arith.constant dense<0.000000e+00> : vector<64x64xf32>
    %63 = tpu.matmul %60, %61, %cst_25 {dimension_numbers = #tpu.dot_dimension_numbers<[1], [1], [0], [0], [0, 0, 1, 0], [], []>} : vector<64x8xf32>, vector<64x8xf32>, vector<64x64xf32> -> vector<64x64xf32>
    %cst_26 = arith.constant dense<0xFF800000> : vector<64xf32>
    %64 = vector.multi_reduction <maximumf>, %63, %cst_26 [1] : vector<64x64xf32> to vector<64xf32>
    %65 = vector.shape_cast %64 : vector<64xf32> to vector<64x1xf32>
    %66 = vector.broadcast %65 : vector<64x1xf32> to vector<64x64xf32>
    %67 = arith.subf %63, %66 : vector<64x64xf32>
    %68 = math.exp %67 : vector<64x64xf32>
    %cst_27 = arith.constant dense<0.000000e+00> : vector<64xf32>
    %69 = vector.multi_reduction <add>, %68, %cst_27 [1] : vector<64x64xf32> to vector<64xf32>
    %70 = vector.shape_cast %69 : vector<64xf32> to vector<64x1xf32>
    %71 = tpu.reciprocal %70 {approx = true} : vector<64x1xf32> -> vector<64x1xf32>
    %72 = vector.broadcast %71 : vector<64x1xf32> to vector<64x64xf32>
    %73 = arith.mulf %68, %72 : vector<64x64xf32>
    %cst_28 = arith.constant dense<0.000000e+00> : vector<64x8xf32>
    %74 = tpu.matmul %73, %62, %cst_28 {dimension_numbers = #tpu.dot_dimension_numbers<[1], [0], [0], [1], [0, 0, 1, 1], [], []>} : vector<64x64xf32>, vector<64x8xf32>, vector<64x8xf32> -> vector<64x8xf32>
    %c0_29 = arith.constant 0 : index
    %c24 = arith.constant 24 : index
    %75 = vector.load %arg11[%c0_29, %c24] : memref<64x32xf32, #tpu.memory_space<vmem>>, vector<64x8xf32>
    tpu.vector_store %arg11[%c0_29, %c24], %74 {strides = array<i32>} : memref<64x32xf32, #tpu.memory_space<vmem>>, vector<64x8xf32>,
    %c0_30 = arith.constant 0 : index
    %c0_31 = arith.constant 0 : index
    %76 = vector.load %arg11[%c0_30, %c0_31] : memref<64x32xf32, #tpu.memory_space<vmem>>, vector<64x32xf32>
    %c0_32 = arith.constant 0 : index
    %c0_33 = arith.constant 0 : index
    %c0_34 = arith.constant 0 : index
    %77 = vector.load %arg7[%c0_32, %c0_33, %c0_34] : memref<1x32x32xf32, #tpu.memory_space<vmem>>, vector<1x32x32xf32>
    %78 = vector.shape_cast %77 : vector<1x32x32xf32> to vector<32x32xf32>
    %cst_35 = arith.constant dense<0.000000e+00> : vector<64x32xf32>
    %79 = tpu.matmul %76, %78, %cst_35 {dimension_numbers = #tpu.dot_dimension_numbers<[1], [0], [0], [1], [0, 0, 1, 1], [], []>} : vector<64x32xf32>, vector<32x32xf32>, vector<64x32xf32> -> vector<64x32xf32>
    %c0_36 = arith.constant 0 : index
    %c0_37 = arith.constant 0 : index
    %c0_38 = arith.constant 0 : index
    %80 = vector.load %arg8[%c0_36, %c0_37, %c0_38] : memref<1x1x32xf32, #tpu.memory_space<vmem>>, vector<1x1x32xf32>
    %81 = vector.shape_cast %80 : vector<1x1x32xf32> to vector<1x32xf32>
    %82 = vector.broadcast %81 : vector<1x32xf32> to vector<64x32xf32>
    %83 = arith.addf %79, %82 : vector<64x32xf32>
    %84 = arith.addf %83, %4 : vector<64x32xf32>
    %c0_39 = arith.constant 0 : index
    %c0_40 = arith.constant 0 : index
    %c0_41 = arith.constant 0 : index
    %85 = vector.load %arg9[%c0_39, %c0_40, %c0_41] : memref<1x32x32xf32, #tpu.memory_space<vmem>>, vector<1x32x32xf32>
    %86 = vector.shape_cast %85 : vector<1x32x32xf32> to vector<32x32xf32>
    %cst_42 = arith.constant dense<0.000000e+00> : vector<64x32xf32>
    %87 = tpu.matmul %84, %86, %cst_42 {dimension_numbers = #tpu.dot_dimension_numbers<[1], [0], [0], [1], [0, 0, 1, 1], [], []>} : vector<64x32xf32>, vector<32x32xf32>, vector<64x32xf32> -> vector<64x32xf32>
    %88 = arith.addf %84, %87 : vector<64x32xf32>
    %c0_43 = arith.constant 0 : index
    %c0_44 = arith.constant 0 : index
    %c0_45 = arith.constant 0 : index
    %89 = vector.load %arg10[%c0_43, %c0_44, %c0_45] : memref<1x64x32xf32, #tpu.memory_space<vmem>>, vector<1x64x32xf32>
    %90 = vector.shape_cast %89 : vector<1x64x32xf32> to vector<64x32xf32>
    %91 = vector.shape_cast %88 : vector<64x32xf32> to vector<1x64x32xf32>
    tpu.vector_store %arg10[%c0_43, %c0_44, %c0_45], %91 {strides = array<i32>} : memref<1x64x32xf32, #tpu.memory_space<vmem>>, vector<1x64x32xf32>,
    return
  }
  func.func @transform_0(%arg0: i32, %arg1: i32) -> (i32, i32, i32) {
    %c0_i32 = arith.constant 0 : i32
    %c0_i32_0 = arith.constant 0 : i32
    %c0_i32_1 = arith.constant 0 : i32
    return %arg0, %c0_i32, %c0_i32_0 : i32, i32, i32
  }
  func.func @transform_1(%arg0: i32, %arg1: i32) -> (i32, i32) {
    %c0_i32 = arith.constant 0 : i32
    %c0_i32_0 = arith.constant 0 : i32
    %c0_i32_1 = arith.constant 0 : i32
    return %c0_i32, %c0_i32_0 : i32, i32
  }
  func.func @transform_2(%arg0: i32, %arg1: i32) -> (i32, i32) {
    %c0_i32 = arith.constant 0 : i32
    %c0_i32_0 = arith.constant 0 : i32
    %c0_i32_1 = arith.constant 0 : i32
    return %c0_i32, %c0_i32_0 : i32, i32
  }
  func.func @transform_3(%arg0: i32, %arg1: i32) -> (i32, i32, i32) {
    %c0_i32 = arith.constant 0 : i32
    %c0_i32_0 = arith.constant 0 : i32
    %c0_i32_1 = arith.constant 0 : i32
    return %arg1, %c0_i32, %c0_i32_0 : i32, i32, i32
  }
  func.func @transform_4(%arg0: i32, %arg1: i32) -> (i32, i32, i32) {
    %c0_i32 = arith.constant 0 : i32
    %c0_i32_0 = arith.constant 0 : i32
    %c0_i32_1 = arith.constant 0 : i32
    return %arg1, %c0_i32, %c0_i32_0 : i32, i32, i32
  }
  func.func @transform_5(%arg0: i32, %arg1: i32) -> (i32, i32, i32) {
    %c0_i32 = arith.constant 0 : i32
    %c0_i32_0 = arith.constant 0 : i32
    %c0_i32_1 = arith.constant 0 : i32
    return %arg1, %c0_i32, %c0_i32_0 : i32, i32, i32
  }
  func.func @transform_6(%arg0: i32, %arg1: i32) -> (i32, i32, i32) {
    %c0_i32 = arith.constant 0 : i32
    %c0_i32_0 = arith.constant 0 : i32
    %c0_i32_1 = arith.constant 0 : i32
    return %arg1, %c0_i32, %c0_i32_0 : i32, i32, i32
  }
  func.func @transform_7(%arg0: i32, %arg1: i32) -> (i32, i32, i32) {
    %c0_i32 = arith.constant 0 : i32
    %c0_i32_0 = arith.constant 0 : i32
    %c0_i32_1 = arith.constant 0 : i32
    return %arg1, %c0_i32, %c0_i32_0 : i32, i32, i32
  }
  func.func @transform_8(%arg0: i32, %arg1: i32) -> (i32, i32, i32) {
    %c0_i32 = arith.constant 0 : i32
    %c0_i32_0 = arith.constant 0 : i32
    %c0_i32_1 = arith.constant 0 : i32
    return %arg0, %c0_i32, %c0_i32_0 : i32, i32, i32
  }
}

</mosaic_0001>

<llo_original>
// kernel: tpu_custom_call.1
$region0: #{tpu_custom_call.1}
  #allocation0 [shape = 'u32[]', space=smem, size = 0x4, offset = 0x4, fixed_abs, tag = 'smem constant byte address 0x4 - core index']
  #allocation1 [shape = 'u32[144,128]{1,0:T(1,128)}', space=vmem, size = 0x12000, scoped, tag = 'internal scratch']
  #allocation2 [shape = 'f32[64,32]{1,0:T(8,128)}', space=vmem, size = 0x8000, scoped, tag = 'scratch operand']
  %s0 = inlined_call_operand.vmem [shape: f32[2,64,32], index: 0, kind: input, shape index: {}]
  %s1 = inlined_call_operand.hbm [shape: f32[32,32], index: 1, kind: input, shape index: {}]
  %s2 = inlined_call_operand.vmem [shape: f32[1,32], index: 2, kind: input, shape index: {}]
  %s3 = inlined_call_operand.vmem [shape: f32[2,32,96], index: 3, kind: input, shape index: {}]
  %s4 = inlined_call_operand.vmem [shape: f32[2,1,96], index: 4, kind: input, shape index: {}]
  %s5 = inlined_call_operand.vmem [shape: f32[2,32,32], index: 5, kind: input, shape index: {}]
  %s6 = inlined_call_operand.vmem [shape: f32[2,1,32], index: 6, kind: input, shape index: {}]
  %s7 = inlined_call_operand.vmem [shape: f32[2,32,32], index: 7, kind: input, shape index: {}]
  %s8 = inlined_call_operand.vmem [shape: f32[2,64,32], index: 8, kind: output, shape index: {}]
  %s9 = sld [smem:[#allocation0]]
  $region73: #{tpu_custom_call.1} parent=0
    _
  %s11 = ssub.s32 1, %s9
  %s12 = scalar_select 0, %s11, %s9
  $region1: #{tpu_custom_call.1} parent=0
    #allocation3 [shape = 'u8[16384]{0}', space=vmem, size = 0x4000, scoped, tag = 'input window, operand 1, single buffered']
    #allocation4 [shape = 's32[2]{0}', space=sflag, size = 0x8, scoped, tag = 'scoped memory for tpu_custom_call.1']
    %13 = vsyncpa [#allocation4], 0
    loop: start=0, step=1, limit=6
    $region2: #{tpu_custom_call.1} parent=1 // loop_pre_header
      _
    $region3: #{tpu_custom_call.1} parent=1 // loop_header
      %s15 = sphi 0, %s19
      %p16 = scmp.ge.s32.totalorder %s15, 6
      %s22 = sphi 0, %s34
      %s23 = sphi 0, %s30
      %s24 = sphi 0, %s22
      %s25 = sphi 0, %s23
      %s26 = sphi 0, %s24
      %s27 = sphi 0, %s25
      %s37 = sphi 0, %s39
      %s40 = sphi 0, %s37
      %s41 = sphi 0, %s40
      %s57 = sphi 0, %s41
      %s61 = sphi 0, %s61
      %s63 = sphi 0, %s61
      %s64 = sphi 0, %s63
      %s78 = sphi 0, %s64
      %s82 = sphi 0, %s82
      %s84 = sphi 0, %s82
      %s85 = sphi 0, %s84
      %s99 = sphi 0, %s85
      %s105 = sphi 0, %s107
      %s108 = sphi 0, %s105
      %s109 = sphi 0, %s108
      %s125 = sphi 0, %s109
      %s131 = sphi 0, %s133
      %s134 = sphi 0, %s131
      %s135 = sphi 0, %s134
      %s151 = sphi 0, %s135
      %s157 = sphi 0, %s159
      %s160 = sphi 0, %s157
      %s161 = sphi 0, %s160
      %s177 = sphi 0, %s161
      %s183 = sphi 0, %s185
      %s186 = sphi 0, %s183
      %s187 = sphi 0, %s186
      %s203 = sphi 0, %s187
      %s209 = sphi 0, %s211
      %s212 = sphi 0, %s209
      %s213 = sphi 0, %s212
      %s229 = sphi 0, %s213
      %s235 = sphi 0, %s237
      %s238 = sphi 0, %s235
      %s239 = sphi 0, %s238
      %s255 = sphi 0, %s239
    $region4: #{tpu_custom_call.1} parent=1 // loop_header_branch
      %18 = sbr.rel (%p16) target = $region8
    $region5: #{tpu_custom_call.1} parent=1 // loop_body
      %s20 = ssub.s32 %s15, 1
      %s21 = ssub.s32 %s15, 2
      %s28 = sadd.s32 1, %s23
      %p29 = scmp.ge.s32.totalorder %s28, 2
      %s30 = scalar_select %p29, 0, %s28
      %s31 = sadd.s32 1, %s22
      %s32 = scalar_select %p29, %s31, %s22
      %p33 = scmp.ge.s32.totalorder %s32, 2
      %s34 = scalar_select %p33, 0, %s32
      %s35 = ssub.s32 %s22, %s34
      %p36 = scmp.eq.s32.totalorder %s35, 0
      %s38 = sadd.s32 %s37, 1
      %s39 = scalar_select %p36, %s37, %s38
      %p42 = pneg %p36
      %p43 = scmp.eq.s32.totalorder %s15, 3
      %p44 = por %p42, %p43
      %p45 = scmp.ne.s32.totalorder %s37, %s40
      %p46 = scmp.eq.s32.totalorder %s15, 0
      %p47 = por %p45, %p46
      %p48 = scmp.ne.s32.totalorder %s37, %s40
      %p49 = scmp.eq.s32.totalorder %s20, 3
      %p50 = por %p48, %p49
      %p51 = scmp.ne.s32.totalorder %s40, %s41
      %p52 = scmp.eq.s32.totalorder %s20, 0
      %p53 = por %p51, %p52
      %p54 = scmp.ne.s32.totalorder %s40, %s41
      %p55 = scmp.eq.s32.totalorder %s21, 3
      %p56 = por %p54, %p55
      %p58 = scmp.ne.s32.totalorder %s41, %s57
      %p59 = scmp.eq.s32.totalorder %s21, 0
      %p60 = por %p58, %p59
      %s62 = sadd.s32 %s61, 1
      %p65 = scmp.eq.s32.totalorder %s15, 3
      %p66 = scmp.ne.s32.totalorder %s61, %s63
      %p67 = scmp.eq.s32.totalorder %s15, 0
      %p68 = por %p66, %p67
      %p69 = scmp.ne.s32.totalorder %s61, %s63
      %p70 = scmp.eq.s32.totalorder %s20, 3
      %p71 = por %p69, %p70
      %p72 = scmp.ne.s32.totalorder %s63, %s64
      %p73 = scmp.eq.s32.totalorder %s20, 0
      %p74 = por %p72, %p73
      %p75 = scmp.ne.s32.totalorder %s63, %s64
      %p76 = scmp.eq.s32.totalorder %s21, 3
      %p77 = por %p75, %p76
      %p79 = scmp.ne.s32.totalorder %s64, %s78
      %p80 = scmp.eq.s32.totalorder %s21, 0
      %p81 = por %p79, %p80
      %s83 = sadd.s32 %s82, 1
      %p86 = scmp.eq.s32.totalorder %s15, 3
      %p87 = scmp.ne.s32.totalorder %s82, %s84
      %p88 = scmp.eq.s32.totalorder %s15, 0
      %p89 = por %p87, %p88
      %p90 = scmp.ne.s32.totalorder %s82, %s84
      %p91 = scmp.eq.s32.totalorder %s20, 3
      %p92 = por %p90, %p91
      %p93 = scmp.ne.s32.totalorder %s84, %s85
      %p94 = scmp.eq.s32.totalorder %s20, 0
      %p95 = por %p93, %p94
      %p96 = scmp.ne.s32.totalorder %s84, %s85
      %p97 = scmp.eq.s32.totalorder %s21, 3
      %p98 = por %p96, %p97
      %p100 = scmp.ne.s32.totalorder %s85, %s99
      %p101 = scmp.eq.s32.totalorder %s21, 0
      %p102 = por %p100, %p101
      %s103 = ssub.s32 %s23, %s30
      %p104 = scmp.eq.s32.totalorder %s103, 0
      %s106 = sadd.s32 %s105, 1
      %s107 = scalar_select %p104, %s105, %s106
      %p110 = pneg %p104
      %p111 = scmp.eq.s32.totalorder %s15, 3
      %p112 = por %p110, %p111
      %p113 = scmp.ne.s32.totalorder %s105, %s108
      %p114 = scmp.eq.s32.totalorder %s15, 0
      %p115 = por %p113, %p114
      %p116 = scmp.ne.s32.totalorder %s105, %s108
      %p117 = scmp.eq.s32.totalorder %s20, 3
      %p118 = por %p116, %p117
      %p119 = scmp.ne.s32.totalorder %s108, %s109
      %p120 = scmp.eq.s32.totalorder %s20, 0
      %p121 = por %p119, %p120
      %p122 = scmp.ne.s32.totalorder %s108, %s109
      %p123 = scmp.eq.s32.totalorder %s21, 3
      %p124 = por %p122, %p123
      %p126 = scmp.ne.s32.totalorder %s109, %s125
      %p127 = scmp.eq.s32.totalorder %s21, 0
      %p128 = por %p126, %p127
      %s129 = ssub.s32 %s23, %s30
      %p130 = scmp.eq.s32.totalorder %s129, 0
      %s132 = sadd.s32 %s131, 1
      %s133 = scalar_select %p130, %s131, %s132
      %p136 = pneg %p130
      %p137 = scmp.eq.s32.totalorder %s15, 3
      %p138 = por %p136, %p137
      %p139 = scmp.ne.s32.totalorder %s131, %s134
      %p140 = scmp.eq.s32.totalorder %s15, 0
      %p141 = por %p139, %p140
      %p142 = scmp.ne.s32.totalorder %s131, %s134
      %p143 = scmp.eq.s32.totalorder %s20, 3
      %p144 = por %p142, %p143
      %p145 = scmp.ne.s32.totalorder %s134, %s135
      %p146 = scmp.eq.s32.totalorder %s20, 0
      %p147 = por %p145, %p146
      %p148 = scmp.ne.s32.totalorder %s134, %s135
      %p149 = scmp.eq.s32.totalorder %s21, 3
      %p150 = por %p148, %p149
      %p152 = scmp.ne.s32.totalorder %s135, %s151
      %p153 = scmp.eq.s32.totalorder %s21, 0
      %p154 = por %p152, %p153
      %s155 = ssub.s32 %s23, %s30
      %p156 = scmp.eq.s32.totalorder %s155, 0
      %s158 = sadd.s32 %s157, 1
      %s159 = scalar_select %p156, %s157, %s158
      %p162 = pneg %p156
      %p163 = scmp.eq.s32.totalorder %s15, 3
      %p164 = por %p162, %p163
      %p165 = scmp.ne.s32.totalorder %s157, %s160
      %p166 = scmp.eq.s32.totalorder %s15, 0
      %p167 = por %p165, %p166
      %p168 = scmp.ne.s32.totalorder %s157, %s160
      %p169 = scmp.eq.s32.totalorder %s20, 3
      %p170 = por %p168, %p169
      %p171 = scmp.ne.s32.totalorder %s160, %s161
      %p172 = scmp.eq.s32.totalorder %s20, 0
      %p173 = por %p171, %p172
      %p174 = scmp.ne.s32.totalorder %s160, %s161
      %p175 = scmp.eq.s32.totalorder %s21, 3
      %p176 = por %p174, %p175
      %p178 = scmp.ne.s32.totalorder %s161, %s177
      %p179 = scmp.eq.s32.totalorder %s21, 0
      %p180 = por %p178, %p179
      %s181 = ssub.s32 %s23, %s30
      %p182 = scmp.eq.s32.totalorder %s181, 0
      %s184 = sadd.s32 %s183, 1
      %s185 = scalar_select %p182, %s183, %s184
      %p188 = pneg %p182
      %p189 = scmp.eq.s32.totalorder %s15, 3
      %p190 = por %p188, %p189
      %p191 = scmp.ne.s32.totalorder %s183, %s186
      %p192 = scmp.eq.s32.totalorder %s15, 0
      %p193 = por %p191, %p192
      %p194 = scmp.ne.s32.totalorder %s183, %s186
      %p195 = scmp.eq.s32.totalorder %s20, 3
      %p196 = por %p194, %p195
      %p197 = scmp.ne.s32.totalorder %s186, %s187
      %p198 = scmp.eq.s32.totalorder %s20, 0
      %p199 = por %p197, %p198
      %p200 = scmp.ne.s32.totalorder %s186, %s187
      %p201 = scmp.eq.s32.totalorder %s21, 3
      %p202 = por %p200, %p201
      %p204 = scmp.ne.s32.totalorder %s187, %s203
      %p205 = scmp.eq.s32.totalorder %s21, 0
      %p206 = por %p204, %p205
      %s207 = ssub.s32 %s23, %s30
      %p208 = scmp.eq.s32.totalorder %s207, 0
      %s210 = sadd.s32 %s209, 1
      %s211 = scalar_select %p208, %s209, %s210
      %p214 = pneg %p208
      %p215 = scmp.eq.s32.totalorder %s15, 3
      %p216 = por %p214, %p215
      %p217 = scmp.ne.s32.totalorder %s209, %s212
      %p218 = scmp.eq.s32.totalorder %s15, 0
      %p219 = por %p217, %p218
      %p220 = scmp.ne.s32.totalorder %s209, %s212
      %p221 = scmp.eq.s32.totalorder %s20, 3
      %p222 = por %p220, %p221
      %p223 = scmp.ne.s32.totalorder %s212, %s213
      %p224 = scmp.eq.s32.totalorder %s20, 0
      %p225 = por %p223, %p224
      %p226 = scmp.ne.s32.totalorder %s212, %s213
      %p227 = scmp.eq.s32.totalorder %s21, 3
      %p228 = por %p226, %p227
      %p230 = scmp.ne.s32.totalorder %s213, %s229
      %p231 = scmp.eq.s32.totalorder %s21, 0
      %p232 = por %p230, %p231
      %s233 = ssub.s32 %s22, %s34
      %p234 = scmp.eq.s32.totalorder %s233, 0
      %s236 = sadd.s32 %s235, 1
      %s237 = scalar_select %p234, %s235, %s236
      %p240 = pneg %p234
      %p241 = scmp.eq.s32.totalorder %s15, 3
      %p242 = por %p240, %p241
      %p243 = scmp.ne.s32.totalorder %s235, %s238
      %p244 = scmp.eq.s32.totalorder %s15, 0
      %p245 = por %p243, %p244
      %p246 = scmp.ne.s32.totalorder %s235, %s238
      %p247 = scmp.eq.s32.totalorder %s20, 3
      %p248 = por %p246, %p247
      %p249 = scmp.ne.s32.totalorder %s238, %s239
      %p250 = scmp.eq.s32.totalorder %s20, 0
      %p251 = por %p249, %p250
      %p252 = scmp.ne.s32.totalorder %s238, %s239
      %p253 = scmp.eq.s32.totalorder %s21, 3
      %p254 = por %p252, %p253
      %p256 = scmp.ne.s32.totalorder %s239, %s255
      %p257 = scmp.eq.s32.totalorder %s21, 0
      %p258 = por %p256, %p257
      %p259 = scmp.le.s32.totalorder 1, %s15
      %p260 = scmp.lt.s32.totalorder %s15, 5
      %p261 = pnand %p259, %p260
      %p262 = pneg %p261
      // Predicated region
      $region9: #{tpu_custom_call.1} parent=5 // pred_check
        _
      $region10: #{tpu_custom_call.1} parent=5 // pred_check_branch
        %264 = sbr.rel (%p261) target = $region12
      $region11: #{tpu_custom_call.1} parent=5 // pred_region
        %s265 = ssub.s32 %s15, 1
        // Predicated region
        $region13: #{tpu_custom_call.1} parent=11 // pred_check
          %p266 = pneg %p74
        $region14: #{tpu_custom_call.1} parent=11 // pred_check_branch
          %268 = sbr.rel (%p266) target = $region16
        $region15: #{tpu_custom_call.1} parent=11 // pred_region
          %s270 = ssub.s32 512, 512
          %271 = vsyncadd [#allocation4], %s270
          %s272 = sshll.u32 [#allocation3], 4
          %s273 = int_to_ptr.vmem [resolvable:$true] %s272
          %278 = dma.hbm_to_vmem [thread:$0]  %s1, 512, %s273, [#allocation4], 128, 128, 8
        $region16: #{tpu_custom_call.1} parent=11 // pred_fallthru
          _
        // Predicated region
        $region17: #{tpu_custom_call.1} parent=11 // pred_check
          %p279 = pneg %p95
        $region18: #{tpu_custom_call.1} parent=11 // pred_check_branch
          %281 = sbr.rel (%p279) target = $region20
        $region19: #{tpu_custom_call.1} parent=11 // pred_region
          _
        $region20: #{tpu_custom_call.1} parent=11 // pred_fallthru
          _
      $region12: #{tpu_custom_call.1} parent=5 // pred_fallthru
        _
      %p282 = scmp.lt.s32.totalorder %s15, 4
      // Predicated region
      $region21: #{tpu_custom_call.1} parent=5 // pred_check
        %p283 = pneg %p282
      $region22: #{tpu_custom_call.1} parent=5 // pred_check_branch
        %285 = sbr.rel (%p283) target = $region24
      $region23: #{tpu_custom_call.1} parent=5 // pred_region
        // Predicated region
        $region25: #{tpu_custom_call.1} parent=23 // pred_check
          %p286 = pneg %p47
        $region26: #{tpu_custom_call.1} parent=23 // pred_check_branch
          %288 = sbr.rel (%p286) target = $region28
        $region27: #{tpu_custom_call.1} parent=23 // pred_region
          %p289 = scmp.lt.s32.totalorder %s22, 1
          %s290 = scalar_select %p289, %s22, 1
          %s291 = smul.addr %s290, 8
          %s292 = smul.addr %s291, 8
          %s293 = scalar_lea.vmem %s0, %s292
        $region28: #{tpu_custom_call.1} parent=23 // pred_fallthru
          _
        // Predicated region
        $region29: #{tpu_custom_call.1} parent=23 // pred_check
          %p294 = pneg %p115
        $region30: #{tpu_custom_call.1} parent=23 // pred_check_branch
          %296 = sbr.rel (%p294) target = $region32
        $region31: #{tpu_custom_call.1} parent=23 // pred_region
          %p297 = scmp.lt.s32.totalorder %s23, 1
          %s298 = scalar_select %p297, %s23, 1
          %s299 = smul.addr %s298, 4
          %s300 = smul.addr %s299, 8
          %s301 = scalar_lea.vmem %s3, %s300
        $region32: #{tpu_custom_call.1} parent=23 // pred_fallthru
          _
        // Predicated region
        $region33: #{tpu_custom_call.1} parent=23 // pred_check
          %p302 = pneg %p141
        $region34: #{tpu_custom_call.1} parent=23 // pred_check_branch
          %304 = sbr.rel (%p302) target = $region36
        $region35: #{tpu_custom_call.1} parent=23 // pred_region
          %p305 = scmp.lt.s32.totalorder %s23, 1
          %s306 = scalar_select %p305, %s23, 1
          %s307 = scalar_lea.vmem %s4, %s306
        $region36: #{tpu_custom_call.1} parent=23 // pred_fallthru
          _
        // Predicated region
        $region37: #{tpu_custom_call.1} parent=23 // pred_check
          %p308 = pneg %p167
        $region38: #{tpu_custom_call.1} parent=23 // pred_check_branch
          %310 = sbr.rel (%p308) target = $region40
        $region39: #{tpu_custom_call.1} parent=23 // pred_region
          %p311 = scmp.lt.s32.totalorder %s23, 1
          %s312 = scalar_select %p311, %s23, 1
          %s313 = smul.addr %s312, 4
          %s314 = smul.addr %s313, 8
          %s315 = scalar_lea.vmem %s5, %s314
        $region40: #{tpu_custom_call.1} parent=23 // pred_fallthru
          _
        // Predicated region
        $region41: #{tpu_custom_call.1} parent=23 // pred_check
          %p316 = pneg %p193
        $region42: #{tpu_custom_call.1} parent=23 // pred_check_branch
          %318 = sbr.rel (%p316) target = $region44
        $region43: #{tpu_custom_call.1} parent=23 // pred_region
          %p319 = scmp.lt.s32.totalorder %s23, 1
          %s320 = scalar_select %p319, %s23, 1
          %s321 = scalar_lea.vmem %s6, %s320
        $region44: #{tpu_custom_call.1} parent=23 // pred_fallthru
          _
        // Predicated region
        $region45: #{tpu_custom_call.1} parent=23 // pred_check
          %p322 = pneg %p219
        $region46: #{tpu_custom_call.1} parent=23 // pred_check_branch
          %324 = sbr.rel (%p322) target = $region48
        $region47: #{tpu_custom_call.1} parent=23 // pred_region
          %p325 = scmp.lt.s32.totalorder %s23, 1
          %s326 = scalar_select %p325, %s23, 1
          %s327 = smul.addr %s326, 4
          %s328 = smul.addr %s327, 8
          %s329 = scalar_lea.vmem %s7, %s328
        $region48: #{tpu_custom_call.1} parent=23 // pred_fallthru
          _
      $region24: #{tpu_custom_call.1} parent=5 // pred_fallthru
        _
      %p330 = scmp.le.s32.totalorder 1, %s15
      %p331 = scmp.lt.s32.totalorder %s15, 5
      %p332 = pnand %p330, %p331
      %p333 = pneg %p332
      // Predicated region
      $region49: #{tpu_custom_call.1} parent=5 // pred_check
        _
      $region50: #{tpu_custom_call.1} parent=5 // pred_check_branch
        %335 = sbr.rel (%p332) target = $region52
      $region51: #{tpu_custom_call.1} parent=5 // pred_region
        %s336 = ssub.s32 %s15, 1
        // Predicated region
        $region53: #{tpu_custom_call.1} parent=51 // pred_check
          %p337 = pneg %p74
        $region54: #{tpu_custom_call.1} parent=51 // pred_check_branch
          %339 = sbr.rel (%p337) target = $region56
        $region55: #{tpu_custom_call.1} parent=51 // pred_region
          %340 = dma.done [#allocation4], 512
        $region56: #{tpu_custom_call.1} parent=51 // pred_fallthru
          _
        %p341 = scmp.lt.s32.totalorder %s24, 1
        %s342 = scalar_select %p341, %s24, 1
        %s343 = smul.addr %s342, 8
        %s344 = smul.addr %s343, 8
        %s345 = scalar_lea.vmem %s0, %s344
        %p346 = pneg %p53
        %p347 = pneg %p50
        %p348 = pneg %p74
        %p349 = pneg %p71
        %p350 = pneg %p95
        %p351 = pneg %p92
        %p352 = scmp.lt.s32.totalorder %s25, 1
        %s353 = scalar_select %p352, %s25, 1
        %s354 = smul.addr %s353, 4
        %s355 = smul.addr %s354, 8
        %s356 = scalar_lea.vmem %s3, %s355
        %p357 = pneg %p121
        %p358 = pneg %p118
        %p359 = scmp.lt.s32.totalorder %s25, 1
        %s360 = scalar_select %p359, %s25, 1
        %s361 = scalar_lea.vmem %s4, %s360
        %p362 = pneg %p147
        %p363 = pneg %p144
        %p364 = scmp.lt.s32.totalorder %s25, 1
        %s365 = scalar_select %p364, %s25, 1
        %s366 = smul.addr %s365, 4
        %s367 = smul.addr %s366, 8
        %s368 = scalar_lea.vmem %s5, %s367
        %p369 = pneg %p173
        %p370 = pneg %p170
        %p371 = scmp.lt.s32.totalorder %s25, 1
        %s372 = scalar_select %p371, %s25, 1
        %s373 = scalar_lea.vmem %s6, %s372
        %p374 = pneg %p199
        %p375 = pneg %p196
        %p376 = scmp.lt.s32.totalorder %s25, 1
        %s377 = scalar_select %p376, %s25, 1
        %s378 = smul.addr %s377, 4
        %s379 = smul.addr %s378, 8
        %s380 = scalar_lea.vmem %s7, %s379
        %p381 = pneg %p225
        %p382 = pneg %p222
        %p383 = pneg %p251
        %p384 = pneg %p248
        %p385 = scmp.lt.s32.totalorder %s24, 1
        %s386 = scalar_select %p385, %s24, 1
        %s387 = smul.addr %s386, 8
        %s388 = smul.addr %s387, 8
        %s389 = scalar_lea.vmem %s8, %s388
        %p390 = scmp.lt.s32.totalorder %s24, 1
        %s391 = scalar_select %p390, %s24, 1
        %s392 = smul.addr %s391, 8
        %s393 = smul.addr %s392, 8
        %s394 = scalar_lea.vmem %s0, %s393
        %p395 = scmp.lt.s32.totalorder %s25, 1
        %s396 = scalar_select %p395, %s25, 1
        %s397 = smul.addr %s396, 4
        %s398 = smul.addr %s397, 8
        %s399 = scalar_lea.vmem %s3, %s398
        %p400 = scmp.lt.s32.totalorder %s25, 1
        %s401 = scalar_select %p400, %s25, 1
        %s402 = scalar_lea.vmem %s4, %s401
        %p403 = scmp.lt.s32.totalorder %s25, 1
        %s404 = scalar_select %p403, %s25, 1
        %s405 = smul.addr %s404, 4
        %s406 = smul.addr %s405, 8
        %s407 = scalar_lea.vmem %s5, %s406
        %p408 = scmp.lt.s32.totalorder %s25, 1
        %s409 = scalar_select %p408, %s25, 1
        %s410 = scalar_lea.vmem %s6, %s409
        %p411 = scmp.lt.s32.totalorder %s25, 1
        %s412 = scalar_select %p411, %s25, 1
        %s413 = smul.addr %s412, 4
        %s414 = smul.addr %s413, 8
        %s415 = scalar_lea.vmem %s7, %s414
        %p416 = scmp.lt.s32.totalorder %s24, 1
        %s417 = scalar_select %p416, %s24, 1
        %s418 = smul.addr %s417, 8
        %s419 = smul.addr %s418, 8
        %s420 = scalar_lea.vmem %s8, %s419
        %p421 = scmp.eq.s32.totalorder %s25, 0
        // Predicated region
        $region57: #{tpu_custom_call.1} parent=51 // pred_check
          %p422 = pneg %p421
        $region58: #{tpu_custom_call.1} parent=51 // pred_check_branch
          %424 = sbr.rel (%p422) target = $region60
        $region59: #{tpu_custom_call.1} parent=51 // pred_region
          %v425 = vld [vmem:[%s394] sm:$0xff]
          %v426 = vld [vmem:[%s394 + $0x8] sm:$0xff]
          %v427 = vld [vmem:[%s394 + $0x10] sm:$0xff]
          %v428 = vld [vmem:[%s394 + $0x18] sm:$0xff]
          %v429 = vld [vmem:[%s394 + $0x20] sm:$0xff]
          %v430 = vld [vmem:[%s394 + $0x28] sm:$0xff]
          %v431 = vld [vmem:[%s394 + $0x30] sm:$0xff]
          %v432 = vld [vmem:[%s394 + $0x38] sm:$0xff]
          %v433 = vld [vmem:[#allocation3] sm:$0xff]
          %v434 = vld [vmem:[#allocation3 + $0x8] sm:$0xff]
          %v435 = vld [vmem:[#allocation3 + $0x10] sm:$0xff]
          %v436 = vld [vmem:[#allocation3 + $0x18] sm:$0xff]
          %vm437 = vcmask 261120
          %v439 = vsel %vm437, %v425, 0
          %v442 = vsel %vm437, %v426, 0
          %v445 = vsel %vm437, %v427, 0
          %v448 = vsel %vm437, %v428, 0
          %v451 = vsel %vm437, %v429, 0
          %v454 = vsel %vm437, %v430, 0
          %v457 = vsel %vm437, %v431, 0
          %v460 = vsel %vm437, %v432, 0
          %462 = vmatprep.subr.mxu0 0.0
          %463 = vmatpush1.msra.mxu0 0.0
          %464 = vmatprep.subr.mxu0 0.0
          %465 = vmatpush1.msra.mxu0 0.0
          %466 = vmatprep.subr.mxu0 0.0
          %467 = vmatpush1.msra.mxu0 0.0
          %468 = vmatprep.subr.mxu0 0.0
          %469 = vmatpush1.msra.mxu0 0.0
          %470 = vmatprep.subr.mxu0 0.0
          %471 = vmatpush1.msra.mxu0 0.0
          %472 = vmatprep.subr.mxu0 0.0
          %473 = vmatpush1.msra.mxu0 0.0
          %474 = vmatprep.subr.mxu0 0.0
          %475 = vmatpush1.msra.mxu0 0.0
          %476 = vmatprep.subr.mxu0 0.0
          %477 = vmatpush1.msra.mxu0 0.0
          %478 = vmatprep.subr.mxu0 0.0
          %479 = vmatpush1.msra.mxu0 0.0
          %480 = vmatprep.subr.mxu0 0.0
          %481 = vmatpush1.msra.mxu0 0.0
          %482 = vmatprep.subr.mxu0 0.0
          %483 = vmatpush1.msra.mxu0 0.0
          %484 = vmatprep.subr.mxu0 0.0
          %485 = vmatpush1.msra.mxu0 0.0
          %486 = vmatprep.subr.mxu0 0.0
          %487 = vmatpush1.msra.mxu0 %v436
          %488 = vmatprep.subr.mxu0 0.0
          %489 = vmatpush1.msra.mxu0 %v435
          %490 = vmatprep.subr.mxu0 0.0
          %491 = vmatpush1.msra.mxu0 %v434
          %492 = vmatprep.subr.mxu0 0.0
          %493 = vmatpush1.msra.mxu0 %v433
          %494 = vmatprep.subr.mxu0 0.0
          %495 = vmatpush2.msra.mxu0 0.0
          %496 = vmatprep.subr.mxu0 0.0
          %497 = vmatpush2.msra.mxu0 0.0
          %498 = vmatprep.subr.mxu0 0.0
          %499 = vmatpush2.msra.mxu0 0.0
          %500 = vmatprep.subr.mxu0 0.0
          %501 = vmatpush2.msra.mxu0 0.0
          %502 = vmatprep.subr.mxu0 0.0
          %503 = vmatpush2.msra.mxu0 0.0
          %504 = vmatprep.subr.mxu0 0.0
          %505 = vmatpush2.msra.mxu0 0.0
          %506 = vmatprep.subr.mxu0 0.0
          %507 = vmatpush2.msra.mxu0 0.0
          %508 = vmatprep.subr.mxu0 0.0
          %509 = vmatpush2.msra.mxu0 0.0
          %510 = vmatprep.subr.mxu0 0.0
          %511 = vmatpush2.msra.mxu0 0.0
          %512 = vmatprep.subr.mxu0 0.0
          %513 = vmatpush2.msra.mxu0 0.0
          %514 = vmatprep.subr.mxu0 0.0
          %515 = vmatpush2.msra.mxu0 0.0
          %516 = vmatprep.subr.mxu0 0.0
          %517 = vmatpush2.msra.mxu0 0.0
          %518 = vmatprep.subr.mxu0 0.0
          %519 = vmatpush2.msra.mxu0 0.0
          %520 = vmatprep.subr.mxu0 0.0
          %521 = vmatpush2.msra.mxu0 0.0
          %522 = vmatprep.subr.mxu0 0.0
          %523 = vmatpush2.msra.mxu0 0.0
          %524 = vmatprep.subr.mxu0 0.0
          %525 = vmatpush2.msra.mxu0 0.0
          %526 = vmatprep.mubr.f32.mxu0 0.0
          %527 = vmatmul.mubr.f32.gmra.mxu0 %v439
          %v528 = vpop.f32.mrf.mxu0
          %v529 = vadd.f32 0.0, %v528
          %v530 = vpop.f32.mrf.mxu0
          %531 = vmatprep.mubr.f32.mxu0 0.0
          %532 = vmatmul.mubr.f32.gmra.mxu0 %v442
          %v533 = vpop.f32.mrf.mxu0
          %v534 = vadd.f32 0.0, %v533
          %v535 = vpop.f32.mrf.mxu0
          %536 = vmatprep.mubr.f32.mxu0 0.0
          %537 = vmatmul.mubr.f32.gmra.mxu0 %v445
          %v538 = vpop.f32.mrf.mxu0
          %v539 = vadd.f32 0.0, %v538
          %v540 = vpop.f32.mrf.mxu0
          %541 = vmatprep.mubr.f32.mxu0 0.0
          %542 = vmatmul.mubr.f32.gmra.mxu0 %v448
          %v543 = vpop.f32.mrf.mxu0
          %v544 = vadd.f32 0.0, %v543
          %v545 = vpop.f32.mrf.mxu0
          %546 = vmatprep.mubr.f32.mxu0 0.0
          %547 = vmatmul.mubr.f32.gmra.mxu0 %v451
          %v548 = vpop.f32.mrf.mxu0
          %v549 = vadd.f32 0.0, %v548
          %v550 = vpop.f32.mrf.mxu0
          %551 = vmatprep.mubr.f32.mxu0 0.0
          %552 = vmatmul.mubr.f32.gmra.mxu0 %v454
          %v553 = vpop.f32.mrf.mxu0
          %v554 = vadd.f32 0.0, %v553
          %v555 = vpop.f32.mrf.mxu0
          %556 = vmatprep.mubr.f32.mxu0 0.0
          %557 = vmatmul.mubr.f32.gmra.mxu0 %v457
          %v558 = vpop.f32.mrf.mxu0
          %v559 = vadd.f32 0.0, %v558
          %v560 = vpop.f32.mrf.mxu0
          %561 = vmatprep.mubr.f32.mxu0 0.0
          %562 = vmatmul.mubr.f32.gmra.mxu0 %v460
          %v563 = vpop.f32.mrf.mxu0
          %v564 = vadd.f32 0.0, %v563
          %v565 = vpop.f32.mrf.mxu0
          %566 = vdwg.mxu0
          %v567 = vadd.f32 %v425, %v529
          %v568 = vadd.f32 %v426, %v534
          %v569 = vadd.f32 %v427, %v539
          %v570 = vadd.f32 %v428, %v544
          %v571 = vadd.f32 %v429, %v549
          %v572 = vadd.f32 %v430, %v554
          %v573 = vadd.f32 %v431, %v559
          %v574 = vadd.f32 %v432, %v564
          %v575 = vld [vmem:[%s2] sm:$0x1]
          %v577 = vlaneseq
          %v578 = vshrl.u32 %v577, 7
          %v579 = vsub.s32 0, %v578
          %v580 = vrot.slane %v575, %v579
          %v582 = vadd.f32 %v567, %v580
          %v583 = vadd.f32 %v568, %v580
          %v584 = vadd.f32 %v569, %v580
          %v585 = vadd.f32 %v570, %v580
          %v586 = vadd.f32 %v571, %v580
          %v587 = vadd.f32 %v572, %v580
          %v588 = vadd.f32 %v573, %v580
          %v589 = vadd.f32 %v574, %v580
          %590 = vst.msk [vmem:[%s420] sm:$0xff] %vm437, %v582
          %591 = vst.msk [vmem:[%s420 + $0x8] sm:$0xff] %vm437, %v583
          %592 = vst.msk [vmem:[%s420 + $0x10] sm:$0xff] %vm437, %v584
          %593 = vst.msk [vmem:[%s420 + $0x18] sm:$0xff] %vm437, %v585
          %594 = vst.msk [vmem:[%s420 + $0x20] sm:$0xff] %vm437, %v586
          %595 = vst.msk [vmem:[%s420 + $0x28] sm:$0xff] %vm437, %v587
          %596 = vst.msk [vmem:[%s420 + $0x30] sm:$0xff] %vm437, %v588
          %597 = vst.msk [vmem:[%s420 + $0x38] sm:$0xff] %vm437, %v589
        $region60: #{tpu_custom_call.1} parent=51 // pred_fallthru
          _
        %v598 = vld [vmem:[%s420] sm:$0xff]
        %v599 = vld [vmem:[%s420 + $0x8] sm:$0xff]
        %v600 = vld [vmem:[%s420 + $0x10] sm:$0xff]
        %v601 = vld [vmem:[%s420 + $0x18] sm:$0xff]
        %v602 = vld [vmem:[%s420 + $0x20] sm:$0xff]
        %v603 = vld [vmem:[%s420 + $0x28] sm:$0xff]
        %v604 = vld [vmem:[%s420 + $0x30] sm:$0xff]
        %v605 = vld [vmem:[%s420 + $0x38] sm:$0xff]
        %v606 = vld [vmem:[%s399] sm:$0xff]
        %v607 = vld [vmem:[%s399 + $0x8] sm:$0xff]
        %v608 = vld [vmem:[%s399 + $0x10] sm:$0xff]
        %v609 = vld [vmem:[%s399 + $0x18] sm:$0xff]
        %v610 = vld [vmem:[%s402] sm:$0x1]
        %v612 = vlaneseq
        %v613 = vshrl.u32 %v612, 7
        %v614 = vsub.s32 0, %v613
        %v615 = vrot.slane %v610, %v614
        %vm617 = vcmask 261120
        %v619 = vsel %vm617, %v598, 0
        %v622 = vsel %vm617, %v599, 0
        %v625 = vsel %vm617, %v600, 0
        %v628 = vsel %vm617, %v601, 0
        %v631 = vsel %vm617, %v602, 0
        %v634 = vsel %vm617, %v603, 0
        %v637 = vsel %vm617, %v604, 0
        %v640 = vsel %vm617, %v605, 0
        %642 = vmatprep.subr.mxu0 0.0
        %643 = vmatpush1.msra.mxu0 0.0
        %644 = vmatprep.subr.mxu0 0.0
        %645 = vmatpush1.msra.mxu0 0.0
        %646 = vmatprep.subr.mxu0 0.0
        %647 = vmatpush1.msra.mxu0 0.0
        %648 = vmatprep.subr.mxu0 0.0
        %649 = vmatpush1.msra.mxu0 0.0
        %650 = vmatprep.subr.mxu0 0.0
        %651 = vmatpush1.msra.mxu0 0.0
        %652 = vmatprep.subr.mxu0 0.0
        %653 = vmatpush1.msra.mxu0 0.0
        %654 = vmatprep.subr.mxu0 0.0
        %655 = vmatpush1.msra.mxu0 0.0
        %656 = vmatprep.subr.mxu0 0.0
        %657 = vmatpush1.msra.mxu0 0.0
        %658 = vmatprep.subr.mxu0 0.0
        %659 = vmatpush1.msra.mxu0 0.0
        %660 = vmatprep.subr.mxu0 0.0
        %661 = vmatpush1.msra.mxu0 0.0
        %662 = vmatprep.subr.mxu0 0.0
        %663 = vmatpush1.msra.mxu0 0.0
        %664 = vmatprep.subr.mxu0 0.0
        %665 = vmatpush1.msra.mxu0 0.0
        %666 = vmatprep.subr.mxu0 0.0
        %667 = vmatpush1.msra.mxu0 %v609
        %668 = vmatprep.subr.mxu0 0.0
        %669 = vmatpush1.msra.mxu0 %v608
        %670 = vmatprep.subr.mxu0 0.0
        %671 = vmatpush1.msra.mxu0 %v607
        %672 = vmatprep.subr.mxu0 0.0
        %673 = vmatpush1.msra.mxu0 %v606
        %674 = vmatprep.subr.mxu0 0.0
        %675 = vmatpush2.msra.mxu0 0.0
        %676 = vmatprep.subr.mxu0 0.0
        %677 = vmatpush2.msra.mxu0 0.0
        %678 = vmatprep.subr.mxu0 0.0
        %679 = vmatpush2.msra.mxu0 0.0
        %680 = vmatprep.subr.mxu0 0.0
        %681 = vmatpush2.msra.mxu0 0.0
        %682 = vmatprep.subr.mxu0 0.0
        %683 = vmatpush2.msra.mxu0 0.0
        %684 = vmatprep.subr.mxu0 0.0
        %685 = vmatpush2.msra.mxu0 0.0
        %686 = vmatprep.subr.mxu0 0.0
        %687 = vmatpush2.msra.mxu0 0.0
        %688 = vmatprep.subr.mxu0 0.0
        %689 = vmatpush2.msra.mxu0 0.0
        %690 = vmatprep.subr.mxu0 0.0
        %691 = vmatpush2.msra.mxu0 0.0
        %692 = vmatprep.subr.mxu0 0.0
        %693 = vmatpush2.msra.mxu0 0.0
        %694 = vmatprep.subr.mxu0 0.0
        %695 = vmatpush2.msra.mxu0 0.0
        %696 = vmatprep.subr.mxu0 0.0
        %697 = vmatpush2.msra.mxu0 0.0
        %698 = vmatprep.subr.mxu0 0.0
        %699 = vmatpush2.msra.mxu0 0.0
        %700 = vmatprep.subr.mxu0 0.0
        %701 = vmatpush2.msra.mxu0 0.0
        %702 = vmatprep.subr.mxu0 0.0
        %703 = vmatpush2.msra.mxu0 0.0
        %704 = vmatprep.subr.mxu0 0.0
        %705 = vmatpush2.msra.mxu0 0.0
        %706 = vmatprep.mubr.f32.mxu0 0.0
        %707 = vmatmul.mubr.f32.gmra.mxu0 %v619
        %v708 = vpop.f32.mrf.mxu0
        %v709 = vadd.f32 %v615, %v708
        %v710 = vpop.f32.mrf.mxu0
        %711 = vmatprep.mubr.f32.mxu0 0.0
        %712 = vmatmul.mubr.f32.gmra.mxu0 %v622
        %v713 = vpop.f32.mrf.mxu0
        %v714 = vadd.f32 %v615, %v713
        %v715 = vpop.f32.mrf.mxu0
        %716 = vmatprep.mubr.f32.mxu0 0.0
        %717 = vmatmul.mubr.f32.gmra.mxu0 %v625
        %v718 = vpop.f32.mrf.mxu0
        %v719 = vadd.f32 %v615, %v718
        %v720 = vpop.f32.mrf.mxu0
        %721 = vmatprep.mubr.f32.mxu0 0.0
        %722 = vmatmul.mubr.f32.gmra.mxu0 %v628
        %v723 = vpop.f32.mrf.mxu0
        %v724 = vadd.f32 %v615, %v723
        %v725 = vpop.f32.mrf.mxu0
        %726 = vmatprep.mubr.f32.mxu0 0.0
        %727 = vmatmul.mubr.f32.gmra.mxu0 %v631
        %v728 = vpop.f32.mrf.mxu0
        %v729 = vadd.f32 %v615, %v728
        %v730 = vpop.f32.mrf.mxu0
        %731 = vmatprep.mubr.f32.mxu0 0.0
        %732 = vmatmul.mubr.f32.gmra.mxu0 %v634
        %v733 = vpop.f32.mrf.mxu0
        %v734 = vadd.f32 %v615, %v733
        %v735 = vpop.f32.mrf.mxu0
        %736 = vmatprep.mubr.f32.mxu0 0.0
        %737 = vmatmul.mubr.f32.gmra.mxu0 %v637
        %v738 = vpop.f32.mrf.mxu0
        %v739 = vadd.f32 %v615, %v738
        %v740 = vpop.f32.mrf.mxu0
        %741 = vmatprep.mubr.f32.mxu0 0.0
        %742 = vmatmul.mubr.f32.gmra.mxu0 %v640
        %v743 = vpop.f32.mrf.mxu0
        %v744 = vadd.f32 %v615, %v743
        %v745 = vpop.f32.mrf.mxu0
        %746 = vdwg.mxu0
        %755 = vrot.lane.b32.xlu0 %v709, 96
        %v756 = vpop.permute.xlu0 %755
        %757 = vrot.lane.b32.xlu0 %v714, 96
        %v758 = vpop.permute.xlu0 %757
        %759 = vrot.lane.b32.xlu0 %v719, 96
        %v760 = vpop.permute.xlu0 %759
        %761 = vrot.lane.b32.xlu0 %v724, 96
        %v762 = vpop.permute.xlu0 %761
        %763 = vrot.lane.b32.xlu0 %v729, 96
        %v764 = vpop.permute.xlu0 %763
        %765 = vrot.lane.b32.xlu0 %v734, 96
        %v766 = vpop.permute.xlu0 %765
        %767 = vrot.lane.b32.xlu0 %v739, 96
        %v768 = vpop.permute.xlu0 %767
        %769 = vrot.lane.b32.xlu0 %v744, 96
        %v770 = vpop.permute.xlu0 %769
        %vm771 = vcmask 64512
        %v772 = vsel %vm771, %v709, 0
        %v774 = vsel %vm771, %v714, 0
        %v776 = vsel %vm771, %v719, 0
        %v778 = vsel %vm771, %v724, 0
        %v780 = vsel %vm771, %v729, 0
        %v782 = vsel %vm771, %v734, 0
        %v784 = vsel %vm771, %v739, 0
        %v786 = vsel %vm771, %v744, 0
        %v788 = vsel %vm771, %v756, 0
        %v790 = vsel %vm771, %v758, 0
        %v792 = vsel %vm771, %v760, 0
        %v794 = vsel %vm771, %v762, 0
        %v796 = vsel %vm771, %v764, 0
        %v798 = vsel %vm771, %v766, 0
        %v800 = vsel %vm771, %v768, 0
        %v802 = vsel %vm771, %v770, 0
        %804 = vmatprep.subr.mxu0 0.0
        %805 = vmatpush1.xpose.msra.mxu0 0.0
        %806 = vmatprep.subr.mxu0 0.0
        %807 = vmatpush1.xpose.msra.mxu0 0.0
        %808 = vmatprep.subr.mxu0 0.0
        %809 = vmatpush1.xpose.msra.mxu0 0.0
        %810 = vmatprep.subr.mxu0 0.0
        %811 = vmatpush1.xpose.msra.mxu0 0.0
        %812 = vmatprep.subr.mxu0 0.0
        %813 = vmatpush1.xpose.msra.mxu0 0.0
        %814 = vmatprep.subr.mxu0 0.0
        %815 = vmatpush1.xpose.msra.mxu0 0.0
        %816 = vmatprep.subr.mxu0 0.0
        %817 = vmatpush1.xpose.msra.mxu0 0.0
        %818 = vmatprep.subr.mxu0 0.0
        %819 = vmatpush1.xpose.msra.mxu0 0.0
        %820 = vmatprep.subr.mxu0 0.0
        %821 = vmatpush1.xpose.msra.mxu0 %v802
        %822 = vmatprep.subr.mxu0 0.0
        %823 = vmatpush1.xpose.msra.mxu0 %v800
        %824 = vmatprep.subr.mxu0 0.0
        %825 = vmatpush1.xpose.msra.mxu0 %v798
        %826 = vmatprep.subr.mxu0 0.0
        %827 = vmatpush1.xpose.msra.mxu0 %v796
        %828 = vmatprep.subr.mxu0 0.0
        %829 = vmatpush1.xpose.msra.mxu0 %v794
        %830 = vmatprep.subr.mxu0 0.0
        %831 = vmatpush1.xpose.msra.mxu0 %v792
        %832 = vmatprep.subr.mxu0 0.0
        %833 = vmatpush1.xpose.msra.mxu0 %v790
        %834 = vmatprep.subr.mxu0 0.0
        %835 = vmatpush1.xpose.msra.mxu0 %v788
        %836 = vmatprep.subr.mxu0 0.0
        %837 = vmatpush2.xpose.msra.mxu0 0.0
        %838 = vmatprep.subr.mxu0 0.0
        %839 = vmatpush2.xpose.msra.mxu0 0.0
        %840 = vmatprep.subr.mxu0 0.0
        %841 = vmatpush2.xpose.msra.mxu0 0.0
        %842 = vmatprep.subr.mxu0 0.0
        %843 = vmatpush2.xpose.msra.mxu0 0.0
        %844 = vmatprep.subr.mxu0 0.0
        %845 = vmatpush2.xpose.msra.mxu0 0.0
        %846 = vmatprep.subr.mxu0 0.0
        %847 = vmatpush2.xpose.msra.mxu0 0.0
        %848 = vmatprep.subr.mxu0 0.0
        %849 = vmatpush2.xpose.msra.mxu0 0.0
        %850 = vmatprep.subr.mxu0 0.0
        %851 = vmatpush2.xpose.msra.mxu0 0.0
        %852 = vmatprep.subr.mxu0 0.0
        %853 = vmatpush2.xpose.msra.mxu0 0.0
        %854 = vmatprep.subr.mxu0 0.0
        %855 = vmatpush2.xpose.msra.mxu0 0.0
        %856 = vmatprep.subr.mxu0 0.0
        %857 = vmatpush2.xpose.msra.mxu0 0.0
        %858 = vmatprep.subr.mxu0 0.0
        %859 = vmatpush2.xpose.msra.mxu0 0.0
        %860 = vmatprep.subr.mxu0 0.0
        %861 = vmatpush2.xpose.msra.mxu0 0.0
        %862 = vmatprep.subr.mxu0 0.0
        %863 = vmatpush2.xpose.msra.mxu0 0.0
        %864 = vmatprep.subr.mxu0 0.0
        %865 = vmatpush2.xpose.msra.mxu0 0.0
        %866 = vmatprep.subr.mxu0 0.0
        %867 = vmatpush2.xpose.msra.mxu0 0.0
        %868 = vmatprep.mubr.f32.mxu0 0.0
        %869 = vmatmul.mubr.f32.gmra.mxu0 %v772
        %v870 = vpop.f32.mrf.mxu0
        %v871 = vadd.f32 0.0, %v870
        %v872 = vpop.f32.mrf.mxu0
        %873 = vmatprep.mubr.f32.mxu0 0.0
        %874 = vmatmul.mubr.f32.gmra.mxu0 %v774
        %v875 = vpop.f32.mrf.mxu0
        %v876 = vadd.f32 0.0, %v875
        %v877 = vpop.f32.mrf.mxu0
        %878 = vmatprep.mubr.f32.mxu0 0.0
        %879 = vmatmul.mubr.f32.gmra.mxu0 %v776
        %v880 = vpop.f32.mrf.mxu0
        %v881 = vadd.f32 0.0, %v880
        %v882 = vpop.f32.mrf.mxu0
        %883 = vmatprep.mubr.f32.mxu0 0.0
        %884 = vmatmul.mubr.f32.gmra.mxu0 %v778
        %v885 = vpop.f32.mrf.mxu0
        %v886 = vadd.f32 0.0, %v885
        %v887 = vpop.f32.mrf.mxu0
        %888 = vmatprep.mubr.f32.mxu0 0.0
        %889 = vmatmul.mubr.f32.gmra.mxu0 %v780
        %v890 = vpop.f32.mrf.mxu0
        %v891 = vadd.f32 0.0, %v890
        %v892 = vpop.f32.mrf.mxu0
        %893 = vmatprep.mubr.f32.mxu0 0.0
        %894 = vmatmul.mubr.f32.gmra.mxu0 %v782
        %v895 = vpop.f32.mrf.mxu0
        %v896 = vadd.f32 0.0, %v895
        %v897 = vpop.f32.mrf.mxu0
        %898 = vmatprep.mubr.f32.mxu0 0.0
        %899 = vmatmul.mubr.f32.gmra.mxu0 %v784
        %v900 = vpop.f32.mrf.mxu0
        %v901 = vadd.f32 0.0, %v900
        %v902 = vpop.f32.mrf.mxu0
        %903 = vmatprep.mubr.f32.mxu0 0.0
        %904 = vmatmul.mubr.f32.gmra.mxu0 %v786
        %v905 = vpop.f32.mrf.mxu0
        %v906 = vadd.f32 0.0, %v905
        %v907 = vpop.f32.mrf.mxu0
        %908 = vdwg.mxu0
        %vm909 = vcmask 523264
        %v910 = vsel %vm909, %v871, -inf
        %911 = vmax.xlane.f32.xlu0 %v910
        %v912 = vpop.xlane.xlu0 %911
        %v913 = vsel %vm909, %v876, -inf
        %914 = vmax.xlane.f32.xlu0 %v913
        %v915 = vpop.xlane.xlu0 %914
        %v916 = vsel %vm909, %v881, -inf
        %917 = vmax.xlane.f32.xlu0 %v916
        %v918 = vpop.xlane.xlu0 %917
        %v919 = vsel %vm909, %v886, -inf
        %920 = vmax.xlane.f32.xlu0 %v919
        %v921 = vpop.xlane.xlu0 %920
        %v922 = vsel %vm909, %v891, -inf
        %923 = vmax.xlane.f32.xlu0 %v922
        %v924 = vpop.xlane.xlu0 %923
        %v925 = vsel %vm909, %v896, -inf
        %926 = vmax.xlane.f32.xlu0 %v925
        %v927 = vpop.xlane.xlu0 %926
        %v928 = vsel %vm909, %v901, -inf
        %929 = vmax.xlane.f32.xlu0 %v928
        %v930 = vpop.xlane.xlu0 %929
        %v931 = vsel %vm909, %v906, -inf
        %932 = vmax.xlane.f32.xlu0 %v931
        %v933 = vpop.xlane.xlu0 %932
        %v934 = vsub.f32 %v871, %v912
        %v935 = vsub.f32 %v876, %v915
        %v936 = vsub.f32 %v881, %v918
        %v937 = vsub.f32 %v886, %v921
        %v938 = vsub.f32 %v891, %v924
        %v939 = vsub.f32 %v896, %v927
        %v940 = vsub.f32 %v901, %v930
        %v941 = vsub.f32 %v906, %v933
        %v942 = vmul.f32 %v934, 1.442695
        %v943 = vpow.pop %v942
        %v944 = vmul.f32 %v935, 1.442695
        %v945 = vpow.pop %v944
        %v946 = vmul.f32 %v936, 1.442695
        %v947 = vpow.pop %v946
        %v948 = vmul.f32 %v937, 1.442695
        %v949 = vpow.pop %v948
        %v950 = vmul.f32 %v938, 1.442695
        %v951 = vpow.pop %v950
        %v952 = vmul.f32 %v939, 1.442695
        %v953 = vpow.pop %v952
        %v954 = vmul.f32 %v940, 1.442695
        %v955 = vpow.pop %v954
        %v956 = vmul.f32 %v941, 1.442695
        %v957 = vpow.pop %v956
        %v958 = vsel %vm909, %v943, 0.0
        %959 = vadd.xlane.f32.xlu0 %v958
        %v960 = vpop.xlane.xlu0 %959
        %v961 = vsel %vm909, %v945, 0.0
        %962 = vadd.xlane.f32.xlu0 %v961
        %v963 = vpop.xlane.xlu0 %962
        %v964 = vsel %vm909, %v947, 0.0
        %965 = vadd.xlane.f32.xlu0 %v964
        %v966 = vpop.xlane.xlu0 %965
        %v967 = vsel %vm909, %v949, 0.0
        %968 = vadd.xlane.f32.xlu0 %v967
        %v969 = vpop.xlane.xlu0 %968
        %v970 = vsel %vm909, %v951, 0.0
        %971 = vadd.xlane.f32.xlu0 %v970
        %v972 = vpop.xlane.xlu0 %971
        %v973 = vsel %vm909, %v953, 0.0
        %974 = vadd.xlane.f32.xlu0 %v973
        %v975 = vpop.xlane.xlu0 %974
        %v976 = vsel %vm909, %v955, 0.0
        %977 = vadd.xlane.f32.xlu0 %v976
        %v978 = vpop.xlane.xlu0 %977
        %v979 = vsel %vm909, %v957, 0.0
        %980 = vadd.xlane.f32.xlu0 %v979
        %v981 = vpop.xlane.xlu0 %980
        %v982 = vrcp.pop %v960
        %v983 = vrcp.pop %v963
        %v984 = vrcp.pop %v966
        %v985 = vrcp.pop %v969
        %v986 = vrcp.pop %v972
        %v987 = vrcp.pop %v975
        %v988 = vrcp.pop %v978
        %v989 = vrcp.pop %v981
        %v990 = vmul.f32 %v943, %v982
        %v991 = vmul.f32 %v945, %v983
        %v992 = vmul.f32 %v947, %v984
        %v993 = vmul.f32 %v949, %v985
        %v994 = vmul.f32 %v951, %v986
        %v995 = vmul.f32 %v953, %v987
        %v996 = vmul.f32 %v955, %v988
        %v997 = vmul.f32 %v957, %v989
        %998 = vrot.lane.b32.xlu0 %v709, 64
        %v999 = vpop.permute.xlu0 %998
        %1000 = vrot.lane.b32.xlu0 %v714, 64
        %v1001 = vpop.permute.xlu0 %1000
        %1002 = vrot.lane.b32.xlu0 %v719, 64
        %v1003 = vpop.permute.xlu0 %1002
        %1004 = vrot.lane.b32.xlu0 %v724, 64
        %v1005 = vpop.permute.xlu0 %1004
        %1006 = vrot.lane.b32.xlu0 %v729, 64
        %v1007 = vpop.permute.xlu0 %1006
        %1008 = vrot.lane.b32.xlu0 %v734, 64
        %v1009 = vpop.permute.xlu0 %1008
        %1010 = vrot.lane.b32.xlu0 %v739, 64
        %v1011 = vpop.permute.xlu0 %1010
        %1012 = vrot.lane.b32.xlu0 %v744, 64
        %v1013 = vpop.permute.xlu0 %1012
        %v1023 = vsel %vm909, %v990, 0
        %v1026 = vsel %vm909, %v991, 0
        %v1029 = vsel %vm909, %v992, 0
        %v1032 = vsel %vm909, %v993, 0
        %v1035 = vsel %vm909, %v994, 0
        %v1038 = vsel %vm909, %v995, 0
        %v1041 = vsel %vm909, %v996, 0
        %v1044 = vsel %vm909, %v997, 0
        %1046 = vmatprep.subr.mxu0 0.0
        %1047 = vmatpush1.msra.mxu0 0.0
        %1048 = vmatprep.subr.mxu0 0.0
        %1049 = vmatpush1.msra.mxu0 0.0
        %1050 = vmatprep.subr.mxu0 0.0
        %1051 = vmatpush1.msra.mxu0 0.0
        %1052 = vmatprep.subr.mxu0 0.0
        %1053 = vmatpush1.msra.mxu0 0.0
        %1054 = vmatprep.subr.mxu0 0.0
        %1055 = vmatpush1.msra.mxu0 0.0
        %1056 = vmatprep.subr.mxu0 0.0
        %1057 = vmatpush1.msra.mxu0 0.0
        %1058 = vmatprep.subr.mxu0 0.0
        %1059 = vmatpush1.msra.mxu0 0.0
        %1060 = vmatprep.subr.mxu0 0.0
        %1061 = vmatpush1.msra.mxu0 0.0
        %1062 = vmatprep.subr.mxu0 0.0
        %1063 = vmatpush1.msra.mxu0 %v1013
        %1064 = vmatprep.subr.mxu0 0.0
        %1065 = vmatpush1.msra.mxu0 %v1011
        %1066 = vmatprep.subr.mxu0 0.0
        %1067 = vmatpush1.msra.mxu0 %v1009
        %1068 = vmatprep.subr.mxu0 0.0
        %1069 = vmatpush1.msra.mxu0 %v1007
        %1070 = vmatprep.subr.mxu0 0.0
        %1071 = vmatpush1.msra.mxu0 %v1005
        %1072 = vmatprep.subr.mxu0 0.0
        %1073 = vmatpush1.msra.mxu0 %v1003
        %1074 = vmatprep.subr.mxu0 0.0
        %1075 = vmatpush1.msra.mxu0 %v1001
        %1076 = vmatprep.subr.mxu0 0.0
        %1077 = vmatpush1.msra.mxu0 %v999
        %1078 = vmatprep.subr.mxu0 0.0
        %1079 = vmatpush2.msra.mxu0 0.0
        %1080 = vmatprep.subr.mxu0 0.0
        %1081 = vmatpush2.msra.mxu0 0.0
        %1082 = vmatprep.subr.mxu0 0.0
        %1083 = vmatpush2.msra.mxu0 0.0
        %1084 = vmatprep.subr.mxu0 0.0
        %1085 = vmatpush2.msra.mxu0 0.0
        %1086 = vmatprep.subr.mxu0 0.0
        %1087 = vmatpush2.msra.mxu0 0.0
        %1088 = vmatprep.subr.mxu0 0.0
        %1089 = vmatpush2.msra.mxu0 0.0
        %1090 = vmatprep.subr.mxu0 0.0
        %1091 = vmatpush2.msra.mxu0 0.0
        %1092 = vmatprep.subr.mxu0 0.0
        %1093 = vmatpush2.msra.mxu0 0.0
        %1094 = vmatprep.subr.mxu0 0.0
        %1095 = vmatpush2.msra.mxu0 0.0
        %1096 = vmatprep.subr.mxu0 0.0
        %1097 = vmatpush2.msra.mxu0 0.0
        %1098 = vmatprep.subr.mxu0 0.0
        %1099 = vmatpush2.msra.mxu0 0.0
        %1100 = vmatprep.subr.mxu0 0.0
        %1101 = vmatpush2.msra.mxu0 0.0
        %1102 = vmatprep.subr.mxu0 0.0
        %1103 = vmatpush2.msra.mxu0 0.0
        %1104 = vmatprep.subr.mxu0 0.0
        %1105 = vmatpush2.msra.mxu0 0.0
        %1106 = vmatprep.subr.mxu0 0.0
        %1107 = vmatpush2.msra.mxu0 0.0
        %1108 = vmatprep.subr.mxu0 0.0
        %1109 = vmatpush2.msra.mxu0 0.0
        %1110 = vmatprep.mubr.f32.mxu0 0.0
        %1111 = vmatmul.mubr.f32.gmra.mxu0 %v1023
        %v1112 = vpop.f32.mrf.mxu0
        %v1113 = vadd.f32 0.0, %v1112
        %v1114 = vpop.f32.mrf.mxu0
        %1115 = vmatprep.mubr.f32.mxu0 0.0
        %1116 = vmatmul.mubr.f32.gmra.mxu0 %v1026
        %v1117 = vpop.f32.mrf.mxu0
        %v1118 = vadd.f32 0.0, %v1117
        %v1119 = vpop.f32.mrf.mxu0
        %1120 = vmatprep.mubr.f32.mxu0 0.0
        %1121 = vmatmul.mubr.f32.gmra.mxu0 %v1029
        %v1122 = vpop.f32.mrf.mxu0
        %v1123 = vadd.f32 0.0, %v1122
        %v1124 = vpop.f32.mrf.mxu0
        %1125 = vmatprep.mubr.f32.mxu0 0.0
        %1126 = vmatmul.mubr.f32.gmra.mxu0 %v1032
        %v1127 = vpop.f32.mrf.mxu0
        %v1128 = vadd.f32 0.0, %v1127
        %v1129 = vpop.f32.mrf.mxu0
        %1130 = vmatprep.mubr.f32.mxu0 0.0
        %1131 = vmatmul.mubr.f32.gmra.mxu0 %v1035
        %v1132 = vpop.f32.mrf.mxu0
        %v1133 = vadd.f32 0.0, %v1132
        %v1134 = vpop.f32.mrf.mxu0
        %1135 = vmatprep.mubr.f32.mxu0 0.0
        %1136 = vmatmul.mubr.f32.gmra.mxu0 %v1038
        %v1137 = vpop.f32.mrf.mxu0
        %v1138 = vadd.f32 0.0, %v1137
        %v1139 = vpop.f32.mrf.mxu0
        %1140 = vmatprep.mubr.f32.mxu0 0.0
        %1141 = vmatmul.mubr.f32.gmra.mxu0 %v1041
        %v1142 = vpop.f32.mrf.mxu0
        %v1143 = vadd.f32 0.0, %v1142
        %v1144 = vpop.f32.mrf.mxu0
        %1145 = vmatprep.mubr.f32.mxu0 0.0
        %1146 = vmatmul.mubr.f32.gmra.mxu0 %v1044
        %v1147 = vpop.f32.mrf.mxu0
        %v1148 = vadd.f32 0.0, %v1147
        %v1149 = vpop.f32.mrf.mxu0
        %1150 = vdwg.mxu0
        %1151 = vst.msk [vmem:[#allocation2] sm:$0xff] %vm771, %v1113
        %1152 = vst.msk [vmem:[#allocation2 + $0x8] sm:$0xff] %vm771, %v1118
        %1153 = vst.msk [vmem:[#allocation2 + $0x10] sm:$0xff] %vm771, %v1123
        %1154 = vst.msk [vmem:[#allocation2 + $0x18] sm:$0xff] %vm771, %v1128
        %1155 = vst.msk [vmem:[#allocation2 + $0x20] sm:$0xff] %vm771, %v1133
        %1156 = vst.msk [vmem:[#allocation2 + $0x28] sm:$0xff] %vm771, %v1138
        %1157 = vst.msk [vmem:[#allocation2 + $0x30] sm:$0xff] %vm771, %v1143
        %1158 = vst.msk [vmem:[#allocation2 + $0x38] sm:$0xff] %vm771, %v1148
        %1159 = vrot.lane.b32.xlu0 %v709, 120
        %v1160 = vpop.permute.xlu0 %1159
        %1161 = vrot.lane.b32.xlu0 %v714, 120
        %v1162 = vpop.permute.xlu0 %1161
        %1163 = vrot.lane.b32.xlu0 %v719, 120
        %v1164 = vpop.permute.xlu0 %1163
        %1165 = vrot.lane.b32.xlu0 %v724, 120
        %v1166 = vpop.permute.xlu0 %1165
        %1167 = vrot.lane.b32.xlu0 %v729, 120
        %v1168 = vpop.permute.xlu0 %1167
        %1169 = vrot.lane.b32.xlu0 %v734, 120
        %v1170 = vpop.permute.xlu0 %1169
        %1171 = vrot.lane.b32.xlu0 %v739, 120
        %v1172 = vpop.permute.xlu0 %1171
        %1173 = vrot.lane.b32.xlu0 %v744, 120
        %v1174 = vpop.permute.xlu0 %1173
        %1175 = vrot.lane.b32.xlu0 %v709, 88
        %v1176 = vpop.permute.xlu0 %1175
        %1177 = vrot.lane.b32.xlu0 %v714, 88
        %v1178 = vpop.permute.xlu0 %1177
        %1179 = vrot.lane.b32.xlu0 %v719, 88
        %v1180 = vpop.permute.xlu0 %1179
        %1181 = vrot.lane.b32.xlu0 %v724, 88
        %v1182 = vpop.permute.xlu0 %1181
        %1183 = vrot.lane.b32.xlu0 %v729, 88
        %v1184 = vpop.permute.xlu0 %1183
        %1185 = vrot.lane.b32.xlu0 %v734, 88
        %v1186 = vpop.permute.xlu0 %1185
        %1187 = vrot.lane.b32.xlu0 %v739, 88
        %v1188 = vpop.permute.xlu0 %1187
        %1189 = vrot.lane.b32.xlu0 %v744, 88
        %v1190 = vpop.permute.xlu0 %1189
        %v1191 = vsel %vm771, %v1160, 0
        %v1193 = vsel %vm771, %v1162, 0
        %v1195 = vsel %vm771, %v1164, 0
        %v1197 = vsel %vm771, %v1166, 0
        %v1199 = vsel %vm771, %v1168, 0
        %v1201 = vsel %vm771, %v1170, 0
        %v1203 = vsel %vm771, %v1172, 0
        %v1205 = vsel %vm771, %v1174, 0
        %v1207 = vsel %vm771, %v1176, 0
        %v1209 = vsel %vm771, %v1178, 0
        %v1211 = vsel %vm771, %v1180, 0
        %v1213 = vsel %vm771, %v1182, 0
        %v1215 = vsel %vm771, %v1184, 0
        %v1217 = vsel %vm771, %v1186, 0
        %v1219 = vsel %vm771, %v1188, 0
        %v1221 = vsel %vm771, %v1190, 0
        %1223 = vmatprep.subr.mxu0 0.0
        %1224 = vmatpush1.xpose.msra.mxu0 0.0
        %1225 = vmatprep.subr.mxu0 0.0
        %1226 = vmatpush1.xpose.msra.mxu0 0.0
        %1227 = vmatprep.subr.mxu0 0.0
        %1228 = vmatpush1.xpose.msra.mxu0 0.0
        %1229 = vmatprep.subr.mxu0 0.0
        %1230 = vmatpush1.xpose.msra.mxu0 0.0
        %1231 = vmatprep.subr.mxu0 0.0
        %1232 = vmatpush1.xpose.msra.mxu0 0.0
        %1233 = vmatprep.subr.mxu0 0.0
        %1234 = vmatpush1.xpose.msra.mxu0 0.0
        %1235 = vmatprep.subr.mxu0 0.0
        %1236 = vmatpush1.xpose.msra.mxu0 0.0
        %1237 = vmatprep.subr.mxu0 0.0
        %1238 = vmatpush1.xpose.msra.mxu0 0.0
        %1239 = vmatprep.subr.mxu0 0.0
        %1240 = vmatpush1.xpose.msra.mxu0 %v1221
        %1241 = vmatprep.subr.mxu0 0.0
        %1242 = vmatpush1.xpose.msra.mxu0 %v1219
        %1243 = vmatprep.subr.mxu0 0.0
        %1244 = vmatpush1.xpose.msra.mxu0 %v1217
        %1245 = vmatprep.subr.mxu0 0.0
        %1246 = vmatpush1.xpose.msra.mxu0 %v1215
        %1247 = vmatprep.subr.mxu0 0.0
        %1248 = vmatpush1.xpose.msra.mxu0 %v1213
        %1249 = vmatprep.subr.mxu0 0.0
        %1250 = vmatpush1.xpose.msra.mxu0 %v1211
        %1251 = vmatprep.subr.mxu0 0.0
        %1252 = vmatpush1.xpose.msra.mxu0 %v1209
        %1253 = vmatprep.subr.mxu0 0.0
        %1254 = vmatpush1.xpose.msra.mxu0 %v1207
        %1255 = vmatprep.subr.mxu0 0.0
        %1256 = vmatpush2.xpose.msra.mxu0 0.0
        %1257 = vmatprep.subr.mxu0 0.0
        %1258 = vmatpush2.xpose.msra.mxu0 0.0
        %1259 = vmatprep.subr.mxu0 0.0
        %1260 = vmatpush2.xpose.msra.mxu0 0.0
        %1261 = vmatprep.subr.mxu0 0.0
        %1262 = vmatpush2.xpose.msra.mxu0 0.0
        %1263 = vmatprep.subr.mxu0 0.0
        %1264 = vmatpush2.xpose.msra.mxu0 0.0
        %1265 = vmatprep.subr.mxu0 0.0
        %1266 = vmatpush2.xpose.msra.mxu0 0.0
        %1267 = vmatprep.subr.mxu0 0.0
        %1268 = vmatpush2.xpose.msra.mxu0 0.0
        %1269 = vmatprep.subr.mxu0 0.0
        %1270 = vmatpush2.xpose.msra.mxu0 0.0
        %1271 = vmatprep.subr.mxu0 0.0
        %1272 = vmatpush2.xpose.msra.mxu0 0.0
        %1273 = vmatprep.subr.mxu0 0.0
        %1274 = vmatpush2.xpose.msra.mxu0 0.0
        %1275 = vmatprep.subr.mxu0 0.0
        %1276 = vmatpush2.xpose.msra.mxu0 0.0
        %1277 = vmatprep.subr.mxu0 0.0
        %1278 = vmatpush2.xpose.msra.mxu0 0.0
        %1279 = vmatprep.subr.mxu0 0.0
        %1280 = vmatpush2.xpose.msra.mxu0 0.0
        %1281 = vmatprep.subr.mxu0 0.0
        %1282 = vmatpush2.xpose.msra.mxu0 0.0
        %1283 = vmatprep.subr.mxu0 0.0
        %1284 = vmatpush2.xpose.msra.mxu0 0.0
        %1285 = vmatprep.subr.mxu0 0.0
        %1286 = vmatpush2.xpose.msra.mxu0 0.0
        %1287 = vmatprep.mubr.f32.mxu0 0.0
        %1288 = vmatmul.mubr.f32.gmra.mxu0 %v1191
        %v1289 = vpop.f32.mrf.mxu0
        %v1290 = vadd.f32 0.0, %v1289
        %v1291 = vpop.f32.mrf.mxu0
        %1292 = vmatprep.mubr.f32.mxu0 0.0
        %1293 = vmatmul.mubr.f32.gmra.mxu0 %v1193
        %v1294 = vpop.f32.mrf.mxu0
        %v1295 = vadd.f32 0.0, %v1294
        %v1296 = vpop.f32.mrf.mxu0
        %1297 = vmatprep.mubr.f32.mxu0 0.0
        %1298 = vmatmul.mubr.f32.gmra.mxu0 %v1195
        %v1299 = vpop.f32.mrf.mxu0
        %v1300 = vadd.f32 0.0, %v1299
        %v1301 = vpop.f32.mrf.mxu0
        %1302 = vmatprep.mubr.f32.mxu0 0.0
        %1303 = vmatmul.mubr.f32.gmra.mxu0 %v1197
        %v1304 = vpop.f32.mrf.mxu0
        %v1305 = vadd.f32 0.0, %v1304
        %v1306 = vpop.f32.mrf.mxu0
        %1307 = vmatprep.mubr.f32.mxu0 0.0
        %1308 = vmatmul.mubr.f32.gmra.mxu0 %v1199
        %v1309 = vpop.f32.mrf.mxu0
        %v1310 = vadd.f32 0.0, %v1309
        %v1311 = vpop.f32.mrf.mxu0
        %1312 = vmatprep.mubr.f32.mxu0 0.0
        %1313 = vmatmul.mubr.f32.gmra.mxu0 %v1201
        %v1314 = vpop.f32.mrf.mxu0
        %v1315 = vadd.f32 0.0, %v1314
        %v1316 = vpop.f32.mrf.mxu0
        %1317 = vmatprep.mubr.f32.mxu0 0.0
        %1318 = vmatmul.mubr.f32.gmra.mxu0 %v1203
        %v1319 = vpop.f32.mrf.mxu0
        %v1320 = vadd.f32 0.0, %v1319
        %v1321 = vpop.f32.mrf.mxu0
        %1322 = vmatprep.mubr.f32.mxu0 0.0
        %1323 = vmatmul.mubr.f32.gmra.mxu0 %v1205
        %v1324 = vpop.f32.mrf.mxu0
        %v1325 = vadd.f32 0.0, %v1324
        %v1326 = vpop.f32.mrf.mxu0
        %1327 = vdwg.mxu0
        %v1328 = vsel %vm909, %v1290, -inf
        %1329 = vmax.xlane.f32.xlu0 %v1328
        %v1330 = vpop.xlane.xlu0 %1329
        %v1331 = vsel %vm909, %v1295, -inf
        %1332 = vmax.xlane.f32.xlu0 %v1331
        %v1333 = vpop.xlane.xlu0 %1332
        %v1334 = vsel %vm909, %v1300, -inf
        %1335 = vmax.xlane.f32.xlu0 %v1334
        %v1336 = vpop.xlane.xlu0 %1335
        %v1337 = vsel %vm909, %v1305, -inf
        %1338 = vmax.xlane.f32.xlu0 %v1337
        %v1339 = vpop.xlane.xlu0 %1338
        %v1340 = vsel %vm909, %v1310, -inf
        %1341 = vmax.xlane.f32.xlu0 %v1340
        %v1342 = vpop.xlane.xlu0 %1341
        %v1343 = vsel %vm909, %v1315, -inf
        %1344 = vmax.xlane.f32.xlu0 %v1343
        %v1345 = vpop.xlane.xlu0 %1344
        %v1346 = vsel %vm909, %v1320, -inf
        %1347 = vmax.xlane.f32.xlu0 %v1346
        %v1348 = vpop.xlane.xlu0 %1347
        %v1349 = vsel %vm909, %v1325, -inf
        %1350 = vmax.xlane.f32.xlu0 %v1349
        %v1351 = vpop.xlane.xlu0 %1350
        %v1352 = vsub.f32 %v1290, %v1330
        %v1353 = vsub.f32 %v1295, %v1333
        %v1354 = vsub.f32 %v1300, %v1336
        %v1355 = vsub.f32 %v1305, %v1339
        %v1356 = vsub.f32 %v1310, %v1342
        %v1357 = vsub.f32 %v1315, %v1345
        %v1358 = vsub.f32 %v1320, %v1348
        %v1359 = vsub.f32 %v1325, %v1351
        %v1360 = vmul.f32 %v1352, 1.442695
        %v1361 = vpow.pop %v1360
        %v1362 = vmul.f32 %v1353, 1.442695
        %v1363 = vpow.pop %v1362
        %v1364 = vmul.f32 %v1354, 1.442695
        %v1365 = vpow.pop %v1364
        %v1366 = vmul.f32 %v1355, 1.442695
        %v1367 = vpow.pop %v1366
        %v1368 = vmul.f32 %v1356, 1.442695
        %v1369 = vpow.pop %v1368
        %v1370 = vmul.f32 %v1357, 1.442695
        %v1371 = vpow.pop %v1370
        %v1372 = vmul.f32 %v1358, 1.442695
        %v1373 = vpow.pop %v1372
        %v1374 = vmul.f32 %v1359, 1.442695
        %v1375 = vpow.pop %v1374
        %v1376 = vsel %vm909, %v1361, 0.0
        %1377 = vadd.xlane.f32.xlu0 %v1376
        %v1378 = vpop.xlane.xlu0 %1377
        %v1379 = vsel %vm909, %v1363, 0.0
        %1380 = vadd.xlane.f32.xlu0 %v1379
        %v1381 = vpop.xlane.xlu0 %1380
        %v1382 = vsel %vm909, %v1365, 0.0
        %1383 = vadd.xlane.f32.xlu0 %v1382
        %v1384 = vpop.xlane.xlu0 %1383
        %v1385 = vsel %vm909, %v1367, 0.0
        %1386 = vadd.xlane.f32.xlu0 %v1385
        %v1387 = vpop.xlane.xlu0 %1386
        %v1388 = vsel %vm909, %v1369, 0.0
        %1389 = vadd.xlane.f32.xlu0 %v1388
        %v1390 = vpop.xlane.xlu0 %1389
        %v1391 = vsel %vm909, %v1371, 0.0
        %1392 = vadd.xlane.f32.xlu0 %v1391
        %v1393 = vpop.xlane.xlu0 %1392
        %v1394 = vsel %vm909, %v1373, 0.0
        %1395 = vadd.xlane.f32.xlu0 %v1394
        %v1396 = vpop.xlane.xlu0 %1395
        %v1397 = vsel %vm909, %v1375, 0.0
        %1398 = vadd.xlane.f32.xlu0 %v1397
        %v1399 = vpop.xlane.xlu0 %1398
        %v1400 = vrcp.pop %v1378
        %v1401 = vrcp.pop %v1381
        %v1402 = vrcp.pop %v1384
        %v1403 = vrcp.pop %v1387
        %v1404 = vrcp.pop %v1390
        %v1405 = vrcp.pop %v1393
        %v1406 = vrcp.pop %v1396
        %v1407 = vrcp.pop %v1399
        %v1408 = vmul.f32 %v1361, %v1400
        %v1409 = vmul.f32 %v1363, %v1401
        %v1410 = vmul.f32 %v1365, %v1402
        %v1411 = vmul.f32 %v1367, %v1403
        %v1412 = vmul.f32 %v1369, %v1404
        %v1413 = vmul.f32 %v1371, %v1405
        %v1414 = vmul.f32 %v1373, %v1406
        %v1415 = vmul.f32 %v1375, %v1407
        %1416 = vrot.lane.b32.xlu0 %v709, 56
        %v1417 = vpop.permute.xlu0 %1416
        %1418 = vrot.lane.b32.xlu0 %v714, 56
        %v1419 = vpop.permute.xlu0 %1418
        %1420 = vrot.lane.b32.xlu0 %v719, 56
        %v1421 = vpop.permute.xlu0 %1420
        %1422 = vrot.lane.b32.xlu0 %v724, 56
        %v1423 = vpop.permute.xlu0 %1422
        %1424 = vrot.lane.b32.xlu0 %v729, 56
        %v1425 = vpop.permute.xlu0 %1424
        %1426 = vrot.lane.b32.xlu0 %v734, 56
        %v1427 = vpop.permute.xlu0 %1426
        %1428 = vrot.lane.b32.xlu0 %v739, 56
        %v1429 = vpop.permute.xlu0 %1428
        %1430 = vrot.lane.b32.xlu0 %v744, 56
        %v1431 = vpop.permute.xlu0 %1430
        %v1441 = vsel %vm909, %v1408, 0
        %v1444 = vsel %vm909, %v1409, 0
        %v1447 = vsel %vm909, %v1410, 0
        %v1450 = vsel %vm909, %v1411, 0
        %v1453 = vsel %vm909, %v1412, 0
        %v1456 = vsel %vm909, %v1413, 0
        %v1459 = vsel %vm909, %v1414, 0
        %v1462 = vsel %vm909, %v1415, 0
        %1464 = vmatprep.subr.mxu0 0.0
        %1465 = vmatpush1.msra.mxu0 0.0
        %1466 = vmatprep.subr.mxu0 0.0
        %1467 = vmatpush1.msra.mxu0 0.0
        %1468 = vmatprep.subr.mxu0 0.0
        %1469 = vmatpush1.msra.mxu0 0.0
        %1470 = vmatprep.subr.mxu0 0.0
        %1471 = vmatpush1.msra.mxu0 0.0
        %1472 = vmatprep.subr.mxu0 0.0
        %1473 = vmatpush1.msra.mxu0 0.0
        %1474 = vmatprep.subr.mxu0 0.0
        %1475 = vmatpush1.msra.mxu0 0.0
        %1476 = vmatprep.subr.mxu0 0.0
        %1477 = vmatpush1.msra.mxu0 0.0
        %1478 = vmatprep.subr.mxu0 0.0
        %1479 = vmatpush1.msra.mxu0 0.0
        %1480 = vmatprep.subr.mxu0 0.0
        %1481 = vmatpush1.msra.mxu0 %v1431
        %1482 = vmatprep.subr.mxu0 0.0
        %1483 = vmatpush1.msra.mxu0 %v1429
        %1484 = vmatprep.subr.mxu0 0.0
        %1485 = vmatpush1.msra.mxu0 %v1427
        %1486 = vmatprep.subr.mxu0 0.0
        %1487 = vmatpush1.msra.mxu0 %v1425
        %1488 = vmatprep.subr.mxu0 0.0
        %1489 = vmatpush1.msra.mxu0 %v1423
        %1490 = vmatprep.subr.mxu0 0.0
        %1491 = vmatpush1.msra.mxu0 %v1421
        %1492 = vmatprep.subr.mxu0 0.0
        %1493 = vmatpush1.msra.mxu0 %v1419
        %1494 = vmatprep.subr.mxu0 0.0
        %1495 = vmatpush1.msra.mxu0 %v1417
        %1496 = vmatprep.subr.mxu0 0.0
        %1497 = vmatpush2.msra.mxu0 0.0
        %1498 = vmatprep.subr.mxu0 0.0
        %1499 = vmatpush2.msra.mxu0 0.0
        %1500 = vmatprep.subr.mxu0 0.0
        %1501 = vmatpush2.msra.mxu0 0.0
        %1502 = vmatprep.subr.mxu0 0.0
        %1503 = vmatpush2.msra.mxu0 0.0
        %1504 = vmatprep.subr.mxu0 0.0
        %1505 = vmatpush2.msra.mxu0 0.0
        %1506 = vmatprep.subr.mxu0 0.0
        %1507 = vmatpush2.msra.mxu0 0.0
        %1508 = vmatprep.subr.mxu0 0.0
        %1509 = vmatpush2.msra.mxu0 0.0
        %1510 = vmatprep.subr.mxu0 0.0
        %1511 = vmatpush2.msra.mxu0 0.0
        %1512 = vmatprep.subr.mxu0 0.0
        %1513 = vmatpush2.msra.mxu0 0.0
        %1514 = vmatprep.subr.mxu0 0.0
        %1515 = vmatpush2.msra.mxu0 0.0
        %1516 = vmatprep.subr.mxu0 0.0
        %1517 = vmatpush2.msra.mxu0 0.0
        %1518 = vmatprep.subr.mxu0 0.0
        %1519 = vmatpush2.msra.mxu0 0.0
        %1520 = vmatprep.subr.mxu0 0.0
        %1521 = vmatpush2.msra.mxu0 0.0
        %1522 = vmatprep.subr.mxu0 0.0
        %1523 = vmatpush2.msra.mxu0 0.0
        %1524 = vmatprep.subr.mxu0 0.0
        %1525 = vmatpush2.msra.mxu0 0.0
        %1526 = vmatprep.subr.mxu0 0.0
        %1527 = vmatpush2.msra.mxu0 0.0
        %1528 = vmatprep.mubr.f32.mxu0 0.0
        %1529 = vmatmul.mubr.f32.gmra.mxu0 %v1441
        %v1530 = vpop.f32.mrf.mxu0
        %v1531 = vadd.f32 0.0, %v1530
        %v1532 = vpop.f32.mrf.mxu0
        %1533 = vmatprep.mubr.f32.mxu0 0.0
        %1534 = vmatmul.mubr.f32.gmra.mxu0 %v1444
        %v1535 = vpop.f32.mrf.mxu0
        %v1536 = vadd.f32 0.0, %v1535
        %v1537 = vpop.f32.mrf.mxu0
        %1538 = vmatprep.mubr.f32.mxu0 0.0
        %1539 = vmatmul.mubr.f32.gmra.mxu0 %v1447
        %v1540 = vpop.f32.mrf.mxu0
        %v1541 = vadd.f32 0.0, %v1540
        %v1542 = vpop.f32.mrf.mxu0
        %1543 = vmatprep.mubr.f32.mxu0 0.0
        %1544 = vmatmul.mubr.f32.gmra.mxu0 %v1450
        %v1545 = vpop.f32.mrf.mxu0
        %v1546 = vadd.f32 0.0, %v1545
        %v1547 = vpop.f32.mrf.mxu0
        %1548 = vmatprep.mubr.f32.mxu0 0.0
        %1549 = vmatmul.mubr.f32.gmra.mxu0 %v1453
        %v1550 = vpop.f32.mrf.mxu0
        %v1551 = vadd.f32 0.0, %v1550
        %v1552 = vpop.f32.mrf.mxu0
        %1553 = vmatprep.mubr.f32.mxu0 0.0
        %1554 = vmatmul.mubr.f32.gmra.mxu0 %v1456
        %v1555 = vpop.f32.mrf.mxu0
        %v1556 = vadd.f32 0.0, %v1555
        %v1557 = vpop.f32.mrf.mxu0
        %1558 = vmatprep.mubr.f32.mxu0 0.0
        %1559 = vmatmul.mubr.f32.gmra.mxu0 %v1459
        %v1560 = vpop.f32.mrf.mxu0
        %v1561 = vadd.f32 0.0, %v1560
        %v1562 = vpop.f32.mrf.mxu0
        %1563 = vmatprep.mubr.f32.mxu0 0.0
        %1564 = vmatmul.mubr.f32.gmra.mxu0 %v1462
        %v1565 = vpop.f32.mrf.mxu0
        %v1566 = vadd.f32 0.0, %v1565
        %v1567 = vpop.f32.mrf.mxu0
        %1568 = vdwg.mxu0
        %1577 = vrot.lane.b32.xlu0 %v1531, 8
        %v1578 = vpop.permute.xlu0 %1577
        %1579 = vrot.lane.b32.xlu0 %v1536, 8
        %v1580 = vpop.permute.xlu0 %1579
        %1581 = vrot.lane.b32.xlu0 %v1541, 8
        %v1582 = vpop.permute.xlu0 %1581
        %1583 = vrot.lane.b32.xlu0 %v1546, 8
        %v1584 = vpop.permute.xlu0 %1583
        %1585 = vrot.lane.b32.xlu0 %v1551, 8
        %v1586 = vpop.permute.xlu0 %1585
        %1587 = vrot.lane.b32.xlu0 %v1556, 8
        %v1588 = vpop.permute.xlu0 %1587
        %1589 = vrot.lane.b32.xlu0 %v1561, 8
        %v1590 = vpop.permute.xlu0 %1589
        %1591 = vrot.lane.b32.xlu0 %v1566, 8
        %v1592 = vpop.permute.xlu0 %1591
        %vm1601 = vcmask 130112
        %1602 = vst.msk [vmem:[#allocation2] sm:$0xff] %vm1601, %v1578
        %1603 = vst.msk [vmem:[#allocation2 + $0x8] sm:$0xff] %vm1601, %v1580
        %1604 = vst.msk [vmem:[#allocation2 + $0x10] sm:$0xff] %vm1601, %v1582
        %1605 = vst.msk [vmem:[#allocation2 + $0x18] sm:$0xff] %vm1601, %v1584
        %1606 = vst.msk [vmem:[#allocation2 + $0x20] sm:$0xff] %vm1601, %v1586
        %1607 = vst.msk [vmem:[#allocation2 + $0x28] sm:$0xff] %vm1601, %v1588
        %1608 = vst.msk [vmem:[#allocation2 + $0x30] sm:$0xff] %vm1601, %v1590
        %1609 = vst.msk [vmem:[#allocation2 + $0x38] sm:$0xff] %vm1601, %v1592
        %1610 = vrot.lane.b32.xlu0 %v709, 112
        %v1611 = vpop.permute.xlu0 %1610
        %1612 = vrot.lane.b32.xlu0 %v714, 112
        %v1613 = vpop.permute.xlu0 %1612
        %1614 = vrot.lane.b32.xlu0 %v719, 112
        %v1615 = vpop.permute.xlu0 %1614
        %1616 = vrot.lane.b32.xlu0 %v724, 112
        %v1617 = vpop.permute.xlu0 %1616
        %1618 = vrot.lane.b32.xlu0 %v729, 112
        %v1619 = vpop.permute.xlu0 %1618
        %1620 = vrot.lane.b32.xlu0 %v734, 112
        %v1621 = vpop.permute.xlu0 %1620
        %1622 = vrot.lane.b32.xlu0 %v739, 112
        %v1623 = vpop.permute.xlu0 %1622
        %1624 = vrot.lane.b32.xlu0 %v744, 112
        %v1625 = vpop.permute.xlu0 %1624
        %1626 = vrot.lane.b32.xlu0 %v709, 80
        %v1627 = vpop.permute.xlu0 %1626
        %1628 = vrot.lane.b32.xlu0 %v714, 80
        %v1629 = vpop.permute.xlu0 %1628
        %1630 = vrot.lane.b32.xlu0 %v719, 80
        %v1631 = vpop.permute.xlu0 %1630
        %1632 = vrot.lane.b32.xlu0 %v724, 80
        %v1633 = vpop.permute.xlu0 %1632
        %1634 = vrot.lane.b32.xlu0 %v729, 80
        %v1635 = vpop.permute.xlu0 %1634
        %1636 = vrot.lane.b32.xlu0 %v734, 80
        %v1637 = vpop.permute.xlu0 %1636
        %1638 = vrot.lane.b32.xlu0 %v739, 80
        %v1639 = vpop.permute.xlu0 %1638
        %1640 = vrot.lane.b32.xlu0 %v744, 80
        %v1641 = vpop.permute.xlu0 %1640
        %v1642 = vsel %vm771, %v1611, 0
        %v1644 = vsel %vm771, %v1613, 0
        %v1646 = vsel %vm771, %v1615, 0
        %v1648 = vsel %vm771, %v1617, 0
        %v1650 = vsel %vm771, %v1619, 0
        %v1652 = vsel %vm771, %v1621, 0
        %v1654 = vsel %vm771, %v1623, 0
        %v1656 = vsel %vm771, %v1625, 0
        %v1658 = vsel %vm771, %v1627, 0
        %v1660 = vsel %vm771, %v1629, 0
        %v1662 = vsel %vm771, %v1631, 0
        %v1664 = vsel %vm771, %v1633, 0
        %v1666 = vsel %vm771, %v1635, 0
        %v1668 = vsel %vm771, %v1637, 0
        %v1670 = vsel %vm771, %v1639, 0
        %v1672 = vsel %vm771, %v1641, 0
        %1674 = vmatprep.subr.mxu0 0.0
        %1675 = vmatpush1.xpose.msra.mxu0 0.0
        %1676 = vmatprep.subr.mxu0 0.0
        %1677 = vmatpush1.xpose.msra.mxu0 0.0
        %1678 = vmatprep.subr.mxu0 0.0
        %1679 = vmatpush1.xpose.msra.mxu0 0.0
        %1680 = vmatprep.subr.mxu0 0.0
        %1681 = vmatpush1.xpose.msra.mxu0 0.0
        %1682 = vmatprep.subr.mxu0 0.0
        %1683 = vmatpush1.xpose.msra.mxu0 0.0
        %1684 = vmatprep.subr.mxu0 0.0
        %1685 = vmatpush1.xpose.msra.mxu0 0.0
        %1686 = vmatprep.subr.mxu0 0.0
        %1687 = vmatpush1.xpose.msra.mxu0 0.0
        %1688 = vmatprep.subr.mxu0 0.0
        %1689 = vmatpush1.xpose.msra.mxu0 0.0
        %1690 = vmatprep.subr.mxu0 0.0
        %1691 = vmatpush1.xpose.msra.mxu0 %v1672
        %1692 = vmatprep.subr.mxu0 0.0
        %1693 = vmatpush1.xpose.msra.mxu0 %v1670
        %1694 = vmatprep.subr.mxu0 0.0
        %1695 = vmatpush1.xpose.msra.mxu0 %v1668
        %1696 = vmatprep.subr.mxu0 0.0
        %1697 = vmatpush1.xpose.msra.mxu0 %v1666
        %1698 = vmatprep.subr.mxu0 0.0
        %1699 = vmatpush1.xpose.msra.mxu0 %v1664
        %1700 = vmatprep.subr.mxu0 0.0
        %1701 = vmatpush1.xpose.msra.mxu0 %v1662
        %1702 = vmatprep.subr.mxu0 0.0
        %1703 = vmatpush1.xpose.msra.mxu0 %v1660
        %1704 = vmatprep.subr.mxu0 0.0
        %1705 = vmatpush1.xpose.msra.mxu0 %v1658
        %1706 = vmatprep.subr.mxu0 0.0
        %1707 = vmatpush2.xpose.msra.mxu0 0.0
        %1708 = vmatprep.subr.mxu0 0.0
        %1709 = vmatpush2.xpose.msra.mxu0 0.0
        %1710 = vmatprep.subr.mxu0 0.0
        %1711 = vmatpush2.xpose.msra.mxu0 0.0
        %1712 = vmatprep.subr.mxu0 0.0
        %1713 = vmatpush2.xpose.msra.mxu0 0.0
        %1714 = vmatprep.subr.mxu0 0.0
        %1715 = vmatpush2.xpose.msra.mxu0 0.0
        %1716 = vmatprep.subr.mxu0 0.0
        %1717 = vmatpush2.xpose.msra.mxu0 0.0
        %1718 = vmatprep.subr.mxu0 0.0
        %1719 = vmatpush2.xpose.msra.mxu0 0.0
        %1720 = vmatprep.subr.mxu0 0.0
        %1721 = vmatpush2.xpose.msra.mxu0 0.0
        %1722 = vmatprep.subr.mxu0 0.0
        %1723 = vmatpush2.xpose.msra.mxu0 0.0
        %1724 = vmatprep.subr.mxu0 0.0
        %1725 = vmatpush2.xpose.msra.mxu0 0.0
        %1726 = vmatprep.subr.mxu0 0.0
        %1727 = vmatpush2.xpose.msra.mxu0 0.0
        %1728 = vmatprep.subr.mxu0 0.0
        %1729 = vmatpush2.xpose.msra.mxu0 0.0
        %1730 = vmatprep.subr.mxu0 0.0
        %1731 = vmatpush2.xpose.msra.mxu0 0.0
        %1732 = vmatprep.subr.mxu0 0.0
        %1733 = vmatpush2.xpose.msra.mxu0 0.0
        %1734 = vmatprep.subr.mxu0 0.0
        %1735 = vmatpush2.xpose.msra.mxu0 0.0
        %1736 = vmatprep.subr.mxu0 0.0
        %1737 = vmatpush2.xpose.msra.mxu0 0.0
        %1738 = vmatprep.mubr.f32.mxu0 0.0
        %1739 = vmatmul.mubr.f32.gmra.mxu0 %v1642
        %v1740 = vpop.f32.mrf.mxu0
        %v1741 = vadd.f32 0.0, %v1740
        %v1742 = vpop.f32.mrf.mxu0
        %1743 = vmatprep.mubr.f32.mxu0 0.0
        %1744 = vmatmul.mubr.f32.gmra.mxu0 %v1644
        %v1745 = vpop.f32.mrf.mxu0
        %v1746 = vadd.f32 0.0, %v1745
        %v1747 = vpop.f32.mrf.mxu0
        %1748 = vmatprep.mubr.f32.mxu0 0.0
        %1749 = vmatmul.mubr.f32.gmra.mxu0 %v1646
        %v1750 = vpop.f32.mrf.mxu0
        %v1751 = vadd.f32 0.0, %v1750
        %v1752 = vpop.f32.mrf.mxu0
        %1753 = vmatprep.mubr.f32.mxu0 0.0
        %1754 = vmatmul.mubr.f32.gmra.mxu0 %v1648
        %v1755 = vpop.f32.mrf.mxu0
        %v1756 = vadd.f32 0.0, %v1755
        %v1757 = vpop.f32.mrf.mxu0
        %1758 = vmatprep.mubr.f32.mxu0 0.0
        %1759 = vmatmul.mubr.f32.gmra.mxu0 %v1650
        %v1760 = vpop.f32.mrf.mxu0
        %v1761 = vadd.f32 0.0, %v1760
        %v1762 = vpop.f32.mrf.mxu0
        %1763 = vmatprep.mubr.f32.mxu0 0.0
        %1764 = vmatmul.mubr.f32.gmra.mxu0 %v1652
        %v1765 = vpop.f32.mrf.mxu0
        %v1766 = vadd.f32 0.0, %v1765
        %v1767 = vpop.f32.mrf.mxu0
        %1768 = vmatprep.mubr.f32.mxu0 0.0
        %1769 = vmatmul.mubr.f32.gmra.mxu0 %v1654
        %v1770 = vpop.f32.mrf.mxu0
        %v1771 = vadd.f32 0.0, %v1770
        %v1772 = vpop.f32.mrf.mxu0
        %1773 = vmatprep.mubr.f32.mxu0 0.0
        %1774 = vmatmul.mubr.f32.gmra.mxu0 %v1656
        %v1775 = vpop.f32.mrf.mxu0
        %v1776 = vadd.f32 0.0, %v1775
        %v1777 = vpop.f32.mrf.mxu0
        %1778 = vdwg.mxu0
        %v1779 = vsel %vm909, %v1741, -inf
        %1780 = vmax.xlane.f32.xlu0 %v1779
        %v1781 = vpop.xlane.xlu0 %1780
        %v1782 = vsel %vm909, %v1746, -inf
        %1783 = vmax.xlane.f32.xlu0 %v1782
        %v1784 = vpop.xlane.xlu0 %1783
        %v1785 = vsel %vm909, %v1751, -inf
        %1786 = vmax.xlane.f32.xlu0 %v1785
        %v1787 = vpop.xlane.xlu0 %1786
        %v1788 = vsel %vm909, %v1756, -inf
        %1789 = vmax.xlane.f32.xlu0 %v1788
        %v1790 = vpop.xlane.xlu0 %1789
        %v1791 = vsel %vm909, %v1761, -inf
        %1792 = vmax.xlane.f32.xlu0 %v1791
        %v1793 = vpop.xlane.xlu0 %1792
        %v1794 = vsel %vm909, %v1766, -inf
        %1795 = vmax.xlane.f32.xlu0 %v1794
        %v1796 = vpop.xlane.xlu0 %1795
        %v1797 = vsel %vm909, %v1771, -inf
        %1798 = vmax.xlane.f32.xlu0 %v1797
        %v1799 = vpop.xlane.xlu0 %1798
        %v1800 = vsel %vm909, %v1776, -inf
        %1801 = vmax.xlane.f32.xlu0 %v1800
        %v1802 = vpop.xlane.xlu0 %1801
        %v1803 = vsub.f32 %v1741, %v1781
        %v1804 = vsub.f32 %v1746, %v1784
        %v1805 = vsub.f32 %v1751, %v1787
        %v1806 = vsub.f32 %v1756, %v1790
        %v1807 = vsub.f32 %v1761, %v1793
        %v1808 = vsub.f32 %v1766, %v1796
        %v1809 = vsub.f32 %v1771, %v1799
        %v1810 = vsub.f32 %v1776, %v1802
        %v1811 = vmul.f32 %v1803, 1.442695
        %v1812 = vpow.pop %v1811
        %v1813 = vmul.f32 %v1804, 1.442695
        %v1814 = vpow.pop %v1813
        %v1815 = vmul.f32 %v1805, 1.442695
        %v1816 = vpow.pop %v1815
        %v1817 = vmul.f32 %v1806, 1.442695
        %v1818 = vpow.pop %v1817
        %v1819 = vmul.f32 %v1807, 1.442695
        %v1820 = vpow.pop %v1819
        %v1821 = vmul.f32 %v1808, 1.442695
        %v1822 = vpow.pop %v1821
        %v1823 = vmul.f32 %v1809, 1.442695
        %v1824 = vpow.pop %v1823
        %v1825 = vmul.f32 %v1810, 1.442695
        %v1826 = vpow.pop %v1825
        %v1827 = vsel %vm909, %v1812, 0.0
        %1828 = vadd.xlane.f32.xlu0 %v1827
        %v1829 = vpop.xlane.xlu0 %1828
        %v1830 = vsel %vm909, %v1814, 0.0
        %1831 = vadd.xlane.f32.xlu0 %v1830
        %v1832 = vpop.xlane.xlu0 %1831
        %v1833 = vsel %vm909, %v1816, 0.0
        %1834 = vadd.xlane.f32.xlu0 %v1833
        %v1835 = vpop.xlane.xlu0 %1834
        %v1836 = vsel %vm909, %v1818, 0.0
        %1837 = vadd.xlane.f32.xlu0 %v1836
        %v1838 = vpop.xlane.xlu0 %1837
        %v1839 = vsel %vm909, %v1820, 0.0
        %1840 = vadd.xlane.f32.xlu0 %v1839
        %v1841 = vpop.xlane.xlu0 %1840
        %v1842 = vsel %vm909, %v1822, 0.0
        %1843 = vadd.xlane.f32.xlu0 %v1842
        %v1844 = vpop.xlane.xlu0 %1843
        %v1845 = vsel %vm909, %v1824, 0.0
        %1846 = vadd.xlane.f32.xlu0 %v1845
        %v1847 = vpop.xlane.xlu0 %1846
        %v1848 = vsel %vm909, %v1826, 0.0
        %1849 = vadd.xlane.f32.xlu0 %v1848
        %v1850 = vpop.xlane.xlu0 %1849
        %v1851 = vrcp.pop %v1829
        %v1852 = vrcp.pop %v1832
        %v1853 = vrcp.pop %v1835
        %v1854 = vrcp.pop %v1838
        %v1855 = vrcp.pop %v1841
        %v1856 = vrcp.pop %v1844
        %v1857 = vrcp.pop %v1847
        %v1858 = vrcp.pop %v1850
        %v1859 = vmul.f32 %v1812, %v1851
        %v1860 = vmul.f32 %v1814, %v1852
        %v1861 = vmul.f32 %v1816, %v1853
        %v1862 = vmul.f32 %v1818, %v1854
        %v1863 = vmul.f32 %v1820, %v1855
        %v1864 = vmul.f32 %v1822, %v1856
        %v1865 = vmul.f32 %v1824, %v1857
        %v1866 = vmul.f32 %v1826, %v1858
        %1867 = vrot.lane.b32.xlu0 %v709, 48
        %v1868 = vpop.permute.xlu0 %1867
        %1869 = vrot.lane.b32.xlu0 %v714, 48
        %v1870 = vpop.permute.xlu0 %1869
        %1871 = vrot.lane.b32.xlu0 %v719, 48
        %v1872 = vpop.permute.xlu0 %1871
        %1873 = vrot.lane.b32.xlu0 %v724, 48
        %v1874 = vpop.permute.xlu0 %1873
        %1875 = vrot.lane.b32.xlu0 %v729, 48
        %v1876 = vpop.permute.xlu0 %1875
        %1877 = vrot.lane.b32.xlu0 %v734, 48
        %v1878 = vpop.permute.xlu0 %1877
        %1879 = vrot.lane.b32.xlu0 %v739, 48
        %v1880 = vpop.permute.xlu0 %1879
        %1881 = vrot.lane.b32.xlu0 %v744, 48
        %v1882 = vpop.permute.xlu0 %1881
        %v1892 = vsel %vm909, %v1859, 0
        %v1895 = vsel %vm909, %v1860, 0
        %v1898 = vsel %vm909, %v1861, 0
        %v1901 = vsel %vm909, %v1862, 0
        %v1904 = vsel %vm909, %v1863, 0
        %v1907 = vsel %vm909, %v1864, 0
        %v1910 = vsel %vm909, %v1865, 0
        %v1913 = vsel %vm909, %v1866, 0
        %1915 = vmatprep.subr.mxu0 0.0
        %1916 = vmatpush1.msra.mxu0 0.0
        %1917 = vmatprep.subr.mxu0 0.0
        %1918 = vmatpush1.msra.mxu0 0.0
        %1919 = vmatprep.subr.mxu0 0.0
        %1920 = vmatpush1.msra.mxu0 0.0
        %1921 = vmatprep.subr.mxu0 0.0
        %1922 = vmatpush1.msra.mxu0 0.0
        %1923 = vmatprep.subr.mxu0 0.0
        %1924 = vmatpush1.msra.mxu0 0.0
        %1925 = vmatprep.subr.mxu0 0.0
        %1926 = vmatpush1.msra.mxu0 0.0
        %1927 = vmatprep.subr.mxu0 0.0
        %1928 = vmatpush1.msra.mxu0 0.0
        %1929 = vmatprep.subr.mxu0 0.0
        %1930 = vmatpush1.msra.mxu0 0.0
        %1931 = vmatprep.subr.mxu0 0.0
        %1932 = vmatpush1.msra.mxu0 %v1882
        %1933 = vmatprep.subr.mxu0 0.0
        %1934 = vmatpush1.msra.mxu0 %v1880
        %1935 = vmatprep.subr.mxu0 0.0
        %1936 = vmatpush1.msra.mxu0 %v1878
        %1937 = vmatprep.subr.mxu0 0.0
        %1938 = vmatpush1.msra.mxu0 %v1876
        %1939 = vmatprep.subr.mxu0 0.0
        %1940 = vmatpush1.msra.mxu0 %v1874
        %1941 = vmatprep.subr.mxu0 0.0
        %1942 = vmatpush1.msra.mxu0 %v1872
        %1943 = vmatprep.subr.mxu0 0.0
        %1944 = vmatpush1.msra.mxu0 %v1870
        %1945 = vmatprep.subr.mxu0 0.0
        %1946 = vmatpush1.msra.mxu0 %v1868
        %1947 = vmatprep.subr.mxu0 0.0
        %1948 = vmatpush2.msra.mxu0 0.0
        %1949 = vmatprep.subr.mxu0 0.0
        %1950 = vmatpush2.msra.mxu0 0.0
        %1951 = vmatprep.subr.mxu0 0.0
        %1952 = vmatpush2.msra.mxu0 0.0
        %1953 = vmatprep.subr.mxu0 0.0
        %1954 = vmatpush2.msra.mxu0 0.0
        %1955 = vmatprep.subr.mxu0 0.0
        %1956 = vmatpush2.msra.mxu0 0.0
        %1957 = vmatprep.subr.mxu0 0.0
        %1958 = vmatpush2.msra.mxu0 0.0
        %1959 = vmatprep.subr.mxu0 0.0
        %1960 = vmatpush2.msra.mxu0 0.0
        %1961 = vmatprep.subr.mxu0 0.0
        %1962 = vmatpush2.msra.mxu0 0.0
        %1963 = vmatprep.subr.mxu0 0.0
        %1964 = vmatpush2.msra.mxu0 0.0
        %1965 = vmatprep.subr.mxu0 0.0
        %1966 = vmatpush2.msra.mxu0 0.0
        %1967 = vmatprep.subr.mxu0 0.0
        %1968 = vmatpush2.msra.mxu0 0.0
        %1969 = vmatprep.subr.mxu0 0.0
        %1970 = vmatpush2.msra.mxu0 0.0
        %1971 = vmatprep.subr.mxu0 0.0
        %1972 = vmatpush2.msra.mxu0 0.0
        %1973 = vmatprep.subr.mxu0 0.0
        %1974 = vmatpush2.msra.mxu0 0.0
        %1975 = vmatprep.subr.mxu0 0.0
        %1976 = vmatpush2.msra.mxu0 0.0
        %1977 = vmatprep.subr.mxu0 0.0
        %1978 = vmatpush2.msra.mxu0 0.0
        %1979 = vmatprep.mubr.f32.mxu0 0.0
        %1980 = vmatmul.mubr.f32.gmra.mxu0 %v1892
        %v1981 = vpop.f32.mrf.mxu0
        %v1982 = vadd.f32 0.0, %v1981
        %v1983 = vpop.f32.mrf.mxu0
        %1984 = vmatprep.mubr.f32.mxu0 0.0
        %1985 = vmatmul.mubr.f32.gmra.mxu0 %v1895
        %v1986 = vpop.f32.mrf.mxu0
        %v1987 = vadd.f32 0.0, %v1986
        %v1988 = vpop.f32.mrf.mxu0
        %1989 = vmatprep.mubr.f32.mxu0 0.0
        %1990 = vmatmul.mubr.f32.gmra.mxu0 %v1898
        %v1991 = vpop.f32.mrf.mxu0
        %v1992 = vadd.f32 0.0, %v1991
        %v1993 = vpop.f32.mrf.mxu0
        %1994 = vmatprep.mubr.f32.mxu0 0.0
        %1995 = vmatmul.mubr.f32.gmra.mxu0 %v1901
        %v1996 = vpop.f32.mrf.mxu0
        %v1997 = vadd.f32 0.0, %v1996
        %v1998 = vpop.f32.mrf.mxu0
        %1999 = vmatprep.mubr.f32.mxu0 0.0
        %2000 = vmatmul.mubr.f32.gmra.mxu0 %v1904
        %v2001 = vpop.f32.mrf.mxu0
        %v2002 = vadd.f32 0.0, %v2001
        %v2003 = vpop.f32.mrf.mxu0
        %2004 = vmatprep.mubr.f32.mxu0 0.0
        %2005 = vmatmul.mubr.f32.gmra.mxu0 %v1907
        %v2006 = vpop.f32.mrf.mxu0
        %v2007 = vadd.f32 0.0, %v2006
        %v2008 = vpop.f32.mrf.mxu0
        %2009 = vmatprep.mubr.f32.mxu0 0.0
        %2010 = vmatmul.mubr.f32.gmra.mxu0 %v1910
        %v2011 = vpop.f32.mrf.mxu0
        %v2012 = vadd.f32 0.0, %v2011
        %v2013 = vpop.f32.mrf.mxu0
        %2014 = vmatprep.mubr.f32.mxu0 0.0
        %2015 = vmatmul.mubr.f32.gmra.mxu0 %v1913
        %v2016 = vpop.f32.mrf.mxu0
        %v2017 = vadd.f32 0.0, %v2016
        %v2018 = vpop.f32.mrf.mxu0
        %2019 = vdwg.mxu0
        %2028 = vrot.lane.b32.xlu0 %v1982, 16
        %v2029 = vpop.permute.xlu0 %2028
        %2030 = vrot.lane.b32.xlu0 %v1987, 16
        %v2031 = vpop.permute.xlu0 %2030
        %2032 = vrot.lane.b32.xlu0 %v1992, 16
        %v2033 = vpop.permute.xlu0 %2032
        %2034 = vrot.lane.b32.xlu0 %v1997, 16
        %v2035 = vpop.permute.xlu0 %2034
        %2036 = vrot.lane.b32.xlu0 %v2002, 16
        %v2037 = vpop.permute.xlu0 %2036
        %2038 = vrot.lane.b32.xlu0 %v2007, 16
        %v2039 = vpop.permute.xlu0 %2038
        %2040 = vrot.lane.b32.xlu0 %v2012, 16
        %v2041 = vpop.permute.xlu0 %2040
        %2042 = vrot.lane.b32.xlu0 %v2017, 16
        %v2043 = vpop.permute.xlu0 %2042
        %vm2052 = vcmask 195712
        %2053 = vst.msk [vmem:[#allocation2] sm:$0xff] %vm2052, %v2029
        %2054 = vst.msk [vmem:[#allocation2 + $0x8] sm:$0xff] %vm2052, %v2031
        %2055 = vst.msk [vmem:[#allocation2 + $0x10] sm:$0xff] %vm2052, %v2033
        %2056 = vst.msk [vmem:[#allocation2 + $0x18] sm:$0xff] %vm2052, %v2035
        %2057 = vst.msk [vmem:[#allocation2 + $0x20] sm:$0xff] %vm2052, %v2037
        %2058 = vst.msk [vmem:[#allocation2 + $0x28] sm:$0xff] %vm2052, %v2039
        %2059 = vst.msk [vmem:[#allocation2 + $0x30] sm:$0xff] %vm2052, %v2041
        %2060 = vst.msk [vmem:[#allocation2 + $0x38] sm:$0xff] %vm2052, %v2043
        %2061 = vrot.lane.b32.xlu0 %v709, 104
        %v2062 = vpop.permute.xlu0 %2061
        %2063 = vrot.lane.b32.xlu0 %v714, 104
        %v2064 = vpop.permute.xlu0 %2063
        %2065 = vrot.lane.b32.xlu0 %v719, 104
        %v2066 = vpop.permute.xlu0 %2065
        %2067 = vrot.lane.b32.xlu0 %v724, 104
        %v2068 = vpop.permute.xlu0 %2067
        %2069 = vrot.lane.b32.xlu0 %v729, 104
        %v2070 = vpop.permute.xlu0 %2069
        %2071 = vrot.lane.b32.xlu0 %v734, 104
        %v2072 = vpop.permute.xlu0 %2071
        %2073 = vrot.lane.b32.xlu0 %v739, 104
        %v2074 = vpop.permute.xlu0 %2073
        %2075 = vrot.lane.b32.xlu0 %v744, 104
        %v2076 = vpop.permute.xlu0 %2075
        %2077 = vrot.lane.b32.xlu0 %v709, 72
        %v2078 = vpop.permute.xlu0 %2077
        %2079 = vrot.lane.b32.xlu0 %v714, 72
        %v2080 = vpop.permute.xlu0 %2079
        %2081 = vrot.lane.b32.xlu0 %v719, 72
        %v2082 = vpop.permute.xlu0 %2081
        %2083 = vrot.lane.b32.xlu0 %v724, 72
        %v2084 = vpop.permute.xlu0 %2083
        %2085 = vrot.lane.b32.xlu0 %v729, 72
        %v2086 = vpop.permute.xlu0 %2085
        %2087 = vrot.lane.b32.xlu0 %v734, 72
        %v2088 = vpop.permute.xlu0 %2087
        %2089 = vrot.lane.b32.xlu0 %v739, 72
        %v2090 = vpop.permute.xlu0 %2089
        %2091 = vrot.lane.b32.xlu0 %v744, 72
        %v2092 = vpop.permute.xlu0 %2091
        %v2093 = vsel %vm771, %v2062, 0
        %v2095 = vsel %vm771, %v2064, 0
        %v2097 = vsel %vm771, %v2066, 0
        %v2099 = vsel %vm771, %v2068, 0
        %v2101 = vsel %vm771, %v2070, 0
        %v2103 = vsel %vm771, %v2072, 0
        %v2105 = vsel %vm771, %v2074, 0
        %v2107 = vsel %vm771, %v2076, 0
        %v2109 = vsel %vm771, %v2078, 0
        %v2111 = vsel %vm771, %v2080, 0
        %v2113 = vsel %vm771, %v2082, 0
        %v2115 = vsel %vm771, %v2084, 0
        %v2117 = vsel %vm771, %v2086, 0
        %v2119 = vsel %vm771, %v2088, 0
        %v2121 = vsel %vm771, %v2090, 0
        %v2123 = vsel %vm771, %v2092, 0
        %2125 = vmatprep.subr.mxu0 0.0
        %2126 = vmatpush1.xpose.msra.mxu0 0.0
        %2127 = vmatprep.subr.mxu0 0.0
        %2128 = vmatpush1.xpose.msra.mxu0 0.0
        %2129 = vmatprep.subr.mxu0 0.0
        %2130 = vmatpush1.xpose.msra.mxu0 0.0
        %2131 = vmatprep.subr.mxu0 0.0
        %2132 = vmatpush1.xpose.msra.mxu0 0.0
        %2133 = vmatprep.subr.mxu0 0.0
        %2134 = vmatpush1.xpose.msra.mxu0 0.0
        %2135 = vmatprep.subr.mxu0 0.0
        %2136 = vmatpush1.xpose.msra.mxu0 0.0
        %2137 = vmatprep.subr.mxu0 0.0
        %2138 = vmatpush1.xpose.msra.mxu0 0.0
        %2139 = vmatprep.subr.mxu0 0.0
        %2140 = vmatpush1.xpose.msra.mxu0 0.0
        %2141 = vmatprep.subr.mxu0 0.0
        %2142 = vmatpush1.xpose.msra.mxu0 %v2123
        %2143 = vmatprep.subr.mxu0 0.0
        %2144 = vmatpush1.xpose.msra.mxu0 %v2121
        %2145 = vmatprep.subr.mxu0 0.0
        %2146 = vmatpush1.xpose.msra.mxu0 %v2119
        %2147 = vmatprep.subr.mxu0 0.0
        %2148 = vmatpush1.xpose.msra.mxu0 %v2117
        %2149 = vmatprep.subr.mxu0 0.0
        %2150 = vmatpush1.xpose.msra.mxu0 %v2115
        %2151 = vmatprep.subr.mxu0 0.0
        %2152 = vmatpush1.xpose.msra.mxu0 %v2113
        %2153 = vmatprep.subr.mxu0 0.0
        %2154 = vmatpush1.xpose.msra.mxu0 %v2111
        %2155 = vmatprep.subr.mxu0 0.0
        %2156 = vmatpush1.xpose.msra.mxu0 %v2109
        %2157 = vmatprep.subr.mxu0 0.0
        %2158 = vmatpush2.xpose.msra.mxu0 0.0
        %2159 = vmatprep.subr.mxu0 0.0
        %2160 = vmatpush2.xpose.msra.mxu0 0.0
        %2161 = vmatprep.subr.mxu0 0.0
        %2162 = vmatpush2.xpose.msra.mxu0 0.0
        %2163 = vmatprep.subr.mxu0 0.0
        %2164 = vmatpush2.xpose.msra.mxu0 0.0
        %2165 = vmatprep.subr.mxu0 0.0
        %2166 = vmatpush2.xpose.msra.mxu0 0.0
        %2167 = vmatprep.subr.mxu0 0.0
        %2168 = vmatpush2.xpose.msra.mxu0 0.0
        %2169 = vmatprep.subr.mxu0 0.0
        %2170 = vmatpush2.xpose.msra.mxu0 0.0
        %2171 = vmatprep.subr.mxu0 0.0
        %2172 = vmatpush2.xpose.msra.mxu0 0.0
        %2173 = vmatprep.subr.mxu0 0.0
        %2174 = vmatpush2.xpose.msra.mxu0 0.0
        %2175 = vmatprep.subr.mxu0 0.0
        %2176 = vmatpush2.xpose.msra.mxu0 0.0
        %2177 = vmatprep.subr.mxu0 0.0
        %2178 = vmatpush2.xpose.msra.mxu0 0.0
        %2179 = vmatprep.subr.mxu0 0.0
        %2180 = vmatpush2.xpose.msra.mxu0 0.0
        %2181 = vmatprep.subr.mxu0 0.0
        %2182 = vmatpush2.xpose.msra.mxu0 0.0
        %2183 = vmatprep.subr.mxu0 0.0
        %2184 = vmatpush2.xpose.msra.mxu0 0.0
        %2185 = vmatprep.subr.mxu0 0.0
        %2186 = vmatpush2.xpose.msra.mxu0 0.0
        %2187 = vmatprep.subr.mxu0 0.0
        %2188 = vmatpush2.xpose.msra.mxu0 0.0
        %2189 = vmatprep.mubr.f32.mxu0 0.0
        %2190 = vmatmul.mubr.f32.gmra.mxu0 %v2093
        %v2191 = vpop.f32.mrf.mxu0
        %v2192 = vadd.f32 0.0, %v2191
        %v2193 = vpop.f32.mrf.mxu0
        %2194 = vmatprep.mubr.f32.mxu0 0.0
        %2195 = vmatmul.mubr.f32.gmra.mxu0 %v2095
        %v2196 = vpop.f32.mrf.mxu0
        %v2197 = vadd.f32 0.0, %v2196
        %v2198 = vpop.f32.mrf.mxu0
        %2199 = vmatprep.mubr.f32.mxu0 0.0
        %2200 = vmatmul.mubr.f32.gmra.mxu0 %v2097
        %v2201 = vpop.f32.mrf.mxu0
        %v2202 = vadd.f32 0.0, %v2201
        %v2203 = vpop.f32.mrf.mxu0
        %2204 = vmatprep.mubr.f32.mxu0 0.0
        %2205 = vmatmul.mubr.f32.gmra.mxu0 %v2099
        %v2206 = vpop.f32.mrf.mxu0
        %v2207 = vadd.f32 0.0, %v2206
        %v2208 = vpop.f32.mrf.mxu0
        %2209 = vmatprep.mubr.f32.mxu0 0.0
        %2210 = vmatmul.mubr.f32.gmra.mxu0 %v2101
        %v2211 = vpop.f32.mrf.mxu0
        %v2212 = vadd.f32 0.0, %v2211
        %v2213 = vpop.f32.mrf.mxu0
        %2214 = vmatprep.mubr.f32.mxu0 0.0
        %2215 = vmatmul.mubr.f32.gmra.mxu0 %v2103
        %v2216 = vpop.f32.mrf.mxu0
        %v2217 = vadd.f32 0.0, %v2216
        %v2218 = vpop.f32.mrf.mxu0
        %2219 = vmatprep.mubr.f32.mxu0 0.0
        %2220 = vmatmul.mubr.f32.gmra.mxu0 %v2105
        %v2221 = vpop.f32.mrf.mxu0
        %v2222 = vadd.f32 0.0, %v2221
        %v2223 = vpop.f32.mrf.mxu0
        %2224 = vmatprep.mubr.f32.mxu0 0.0
        %2225 = vmatmul.mubr.f32.gmra.mxu0 %v2107
        %v2226 = vpop.f32.mrf.mxu0
        %v2227 = vadd.f32 0.0, %v2226
        %v2228 = vpop.f32.mrf.mxu0
        %2229 = vdwg.mxu0
        %v2230 = vsel %vm909, %v2192, -inf
        %2231 = vmax.xlane.f32.xlu0 %v2230
        %v2232 = vpop.xlane.xlu0 %2231
        %v2233 = vsel %vm909, %v2197, -inf
        %2234 = vmax.xlane.f32.xlu0 %v2233
        %v2235 = vpop.xlane.xlu0 %2234
        %v2236 = vsel %vm909, %v2202, -inf
        %2237 = vmax.xlane.f32.xlu0 %v2236
        %v2238 = vpop.xlane.xlu0 %2237
        %v2239 = vsel %vm909, %v2207, -inf
        %2240 = vmax.xlane.f32.xlu0 %v2239
        %v2241 = vpop.xlane.xlu0 %2240
        %v2242 = vsel %vm909, %v2212, -inf
        %2243 = vmax.xlane.f32.xlu0 %v2242
        %v2244 = vpop.xlane.xlu0 %2243
        %v2245 = vsel %vm909, %v2217, -inf
        %2246 = vmax.xlane.f32.xlu0 %v2245
        %v2247 = vpop.xlane.xlu0 %2246
        %v2248 = vsel %vm909, %v2222, -inf
        %2249 = vmax.xlane.f32.xlu0 %v2248
        %v2250 = vpop.xlane.xlu0 %2249
        %v2251 = vsel %vm909, %v2227, -inf
        %2252 = vmax.xlane.f32.xlu0 %v2251
        %v2253 = vpop.xlane.xlu0 %2252
        %v2254 = vsub.f32 %v2192, %v2232
        %v2255 = vsub.f32 %v2197, %v2235
        %v2256 = vsub.f32 %v2202, %v2238
        %v2257 = vsub.f32 %v2207, %v2241
        %v2258 = vsub.f32 %v2212, %v2244
        %v2259 = vsub.f32 %v2217, %v2247
        %v2260 = vsub.f32 %v2222, %v2250
        %v2261 = vsub.f32 %v2227, %v2253
        %v2262 = vmul.f32 %v2254, 1.442695
        %v2263 = vpow.pop %v2262
        %v2264 = vmul.f32 %v2255, 1.442695
        %v2265 = vpow.pop %v2264
        %v2266 = vmul.f32 %v2256, 1.442695
        %v2267 = vpow.pop %v2266
        %v2268 = vmul.f32 %v2257, 1.442695
        %v2269 = vpow.pop %v2268
        %v2270 = vmul.f32 %v2258, 1.442695
        %v2271 = vpow.pop %v2270
        %v2272 = vmul.f32 %v2259, 1.442695
        %v2273 = vpow.pop %v2272
        %v2274 = vmul.f32 %v2260, 1.442695
        %v2275 = vpow.pop %v2274
        %v2276 = vmul.f32 %v2261, 1.442695
        %v2277 = vpow.pop %v2276
        %v2278 = vsel %vm909, %v2263, 0.0
        %2279 = vadd.xlane.f32.xlu0 %v2278
        %v2280 = vpop.xlane.xlu0 %2279
        %v2281 = vsel %vm909, %v2265, 0.0
        %2282 = vadd.xlane.f32.xlu0 %v2281
        %v2283 = vpop.xlane.xlu0 %2282
        %v2284 = vsel %vm909, %v2267, 0.0
        %2285 = vadd.xlane.f32.xlu0 %v2284
        %v2286 = vpop.xlane.xlu0 %2285
        %v2287 = vsel %vm909, %v2269, 0.0
        %2288 = vadd.xlane.f32.xlu0 %v2287
        %v2289 = vpop.xlane.xlu0 %2288
        %v2290 = vsel %vm909, %v2271, 0.0
        %2291 = vadd.xlane.f32.xlu0 %v2290
        %v2292 = vpop.xlane.xlu0 %2291
        %v2293 = vsel %vm909, %v2273, 0.0
        %2294 = vadd.xlane.f32.xlu0 %v2293
        %v2295 = vpop.xlane.xlu0 %2294
        %v2296 = vsel %vm909, %v2275, 0.0
        %2297 = vadd.xlane.f32.xlu0 %v2296
        %v2298 = vpop.xlane.xlu0 %2297
        %v2299 = vsel %vm909, %v2277, 0.0
        %2300 = vadd.xlane.f32.xlu0 %v2299
        %v2301 = vpop.xlane.xlu0 %2300
        %v2302 = vrcp.pop %v2280
        %v2303 = vrcp.pop %v2283
        %v2304 = vrcp.pop %v2286
        %v2305 = vrcp.pop %v2289
        %v2306 = vrcp.pop %v2292
        %v2307 = vrcp.pop %v2295
        %v2308 = vrcp.pop %v2298
        %v2309 = vrcp.pop %v2301
        %v2310 = vmul.f32 %v2263, %v2302
        %v2311 = vmul.f32 %v2265, %v2303
        %v2312 = vmul.f32 %v2267, %v2304
        %v2313 = vmul.f32 %v2269, %v2305
        %v2314 = vmul.f32 %v2271, %v2306
        %v2315 = vmul.f32 %v2273, %v2307
        %v2316 = vmul.f32 %v2275, %v2308
        %v2317 = vmul.f32 %v2277, %v2309
        %2318 = vrot.lane.b32.xlu0 %v709, 40
        %v2319 = vpop.permute.xlu0 %2318
        %2320 = vrot.lane.b32.xlu0 %v714, 40
        %v2321 = vpop.permute.xlu0 %2320
        %2322 = vrot.lane.b32.xlu0 %v719, 40
        %v2323 = vpop.permute.xlu0 %2322
        %2324 = vrot.lane.b32.xlu0 %v724, 40
        %v2325 = vpop.permute.xlu0 %2324
        %2326 = vrot.lane.b32.xlu0 %v729, 40
        %v2327 = vpop.permute.xlu0 %2326
        %2328 = vrot.lane.b32.xlu0 %v734, 40
        %v2329 = vpop.permute.xlu0 %2328
        %2330 = vrot.lane.b32.xlu0 %v739, 40
        %v2331 = vpop.permute.xlu0 %2330
        %2332 = vrot.lane.b32.xlu0 %v744, 40
        %v2333 = vpop.permute.xlu0 %2332
        %v2343 = vsel %vm909, %v2310, 0
        %v2346 = vsel %vm909, %v2311, 0
        %v2349 = vsel %vm909, %v2312, 0
        %v2352 = vsel %vm909, %v2313, 0
        %v2355 = vsel %vm909, %v2314, 0
        %v2358 = vsel %vm909, %v2315, 0
        %v2361 = vsel %vm909, %v2316, 0
        %v2364 = vsel %vm909, %v2317, 0
        %2366 = vmatprep.subr.mxu0 0.0
        %2367 = vmatpush1.msra.mxu0 0.0
        %2368 = vmatprep.subr.mxu0 0.0
        %2369 = vmatpush1.msra.mxu0 0.0
        %2370 = vmatprep.subr.mxu0 0.0
        %2371 = vmatpush1.msra.mxu0 0.0
        %2372 = vmatprep.subr.mxu0 0.0
        %2373 = vmatpush1.msra.mxu0 0.0
        %2374 = vmatprep.subr.mxu0 0.0
        %2375 = vmatpush1.msra.mxu0 0.0
        %2376 = vmatprep.subr.mxu0 0.0
        %2377 = vmatpush1.msra.mxu0 0.0
        %2378 = vmatprep.subr.mxu0 0.0
        %2379 = vmatpush1.msra.mxu0 0.0
        %2380 = vmatprep.subr.mxu0 0.0
        %2381 = vmatpush1.msra.mxu0 0.0
        %2382 = vmatprep.subr.mxu0 0.0
        %2383 = vmatpush1.msra.mxu0 %v2333
        %2384 = vmatprep.subr.mxu0 0.0
        %2385 = vmatpush1.msra.mxu0 %v2331
        %2386 = vmatprep.subr.mxu0 0.0
        %2387 = vmatpush1.msra.mxu0 %v2329
        %2388 = vmatprep.subr.mxu0 0.0
        %2389 = vmatpush1.msra.mxu0 %v2327
        %2390 = vmatprep.subr.mxu0 0.0
        %2391 = vmatpush1.msra.mxu0 %v2325
        %2392 = vmatprep.subr.mxu0 0.0
        %2393 = vmatpush1.msra.mxu0 %v2323
        %2394 = vmatprep.subr.mxu0 0.0
        %2395 = vmatpush1.msra.mxu0 %v2321
        %2396 = vmatprep.subr.mxu0 0.0
        %2397 = vmatpush1.msra.mxu0 %v2319
        %2398 = vmatprep.subr.mxu0 0.0
        %2399 = vmatpush2.msra.mxu0 0.0
        %2400 = vmatprep.subr.mxu0 0.0
        %2401 = vmatpush2.msra.mxu0 0.0
        %2402 = vmatprep.subr.mxu0 0.0
        %2403 = vmatpush2.msra.mxu0 0.0
        %2404 = vmatprep.subr.mxu0 0.0
        %2405 = vmatpush2.msra.mxu0 0.0
        %2406 = vmatprep.subr.mxu0 0.0
        %2407 = vmatpush2.msra.mxu0 0.0
        %2408 = vmatprep.subr.mxu0 0.0
        %2409 = vmatpush2.msra.mxu0 0.0
        %2410 = vmatprep.subr.mxu0 0.0
        %2411 = vmatpush2.msra.mxu0 0.0
        %2412 = vmatprep.subr.mxu0 0.0
        %2413 = vmatpush2.msra.mxu0 0.0
        %2414 = vmatprep.subr.mxu0 0.0
        %2415 = vmatpush2.msra.mxu0 0.0
        %2416 = vmatprep.subr.mxu0 0.0
        %2417 = vmatpush2.msra.mxu0 0.0
        %2418 = vmatprep.subr.mxu0 0.0
        %2419 = vmatpush2.msra.mxu0 0.0
        %2420 = vmatprep.subr.mxu0 0.0
        %2421 = vmatpush2.msra.mxu0 0.0
        %2422 = vmatprep.subr.mxu0 0.0
        %2423 = vmatpush2.msra.mxu0 0.0
        %2424 = vmatprep.subr.mxu0 0.0
        %2425 = vmatpush2.msra.mxu0 0.0
        %2426 = vmatprep.subr.mxu0 0.0
        %2427 = vmatpush2.msra.mxu0 0.0
        %2428 = vmatprep.subr.mxu0 0.0
        %2429 = vmatpush2.msra.mxu0 0.0
        %2430 = vmatprep.mubr.f32.mxu0 0.0
        %2431 = vmatmul.mubr.f32.gmra.mxu0 %v2343
        %v2432 = vpop.f32.mrf.mxu0
        %v2433 = vadd.f32 0.0, %v2432
        %v2434 = vpop.f32.mrf.mxu0
        %2435 = vmatprep.mubr.f32.mxu0 0.0
        %2436 = vmatmul.mubr.f32.gmra.mxu0 %v2346
        %v2437 = vpop.f32.mrf.mxu0
        %v2438 = vadd.f32 0.0, %v2437
        %v2439 = vpop.f32.mrf.mxu0
        %2440 = vmatprep.mubr.f32.mxu0 0.0
        %2441 = vmatmul.mubr.f32.gmra.mxu0 %v2349
        %v2442 = vpop.f32.mrf.mxu0
        %v2443 = vadd.f32 0.0, %v2442
        %v2444 = vpop.f32.mrf.mxu0
        %2445 = vmatprep.mubr.f32.mxu0 0.0
        %2446 = vmatmul.mubr.f32.gmra.mxu0 %v2352
        %v2447 = vpop.f32.mrf.mxu0
        %v2448 = vadd.f32 0.0, %v2447
        %v2449 = vpop.f32.mrf.mxu0
        %2450 = vmatprep.mubr.f32.mxu0 0.0
        %2451 = vmatmul.mubr.f32.gmra.mxu0 %v2355
        %v2452 = vpop.f32.mrf.mxu0
        %v2453 = vadd.f32 0.0, %v2452
        %v2454 = vpop.f32.mrf.mxu0
        %2455 = vmatprep.mubr.f32.mxu0 0.0
        %2456 = vmatmul.mubr.f32.gmra.mxu0 %v2358
        %v2457 = vpop.f32.mrf.mxu0
        %v2458 = vadd.f32 0.0, %v2457
        %v2459 = vpop.f32.mrf.mxu0
        %2460 = vmatprep.mubr.f32.mxu0 0.0
        %2461 = vmatmul.mubr.f32.gmra.mxu0 %v2361
        %v2462 = vpop.f32.mrf.mxu0
        %v2463 = vadd.f32 0.0, %v2462
        %v2464 = vpop.f32.mrf.mxu0
        %2465 = vmatprep.mubr.f32.mxu0 0.0
        %2466 = vmatmul.mubr.f32.gmra.mxu0 %v2364
        %v2467 = vpop.f32.mrf.mxu0
        %v2468 = vadd.f32 0.0, %v2467
        %v2469 = vpop.f32.mrf.mxu0
        %2470 = vdwg.mxu0
        %2479 = vrot.lane.b32.xlu0 %v2433, 24
        %v2480 = vpop.permute.xlu0 %2479
        %2481 = vrot.lane.b32.xlu0 %v2438, 24
        %v2482 = vpop.permute.xlu0 %2481
        %2483 = vrot.lane.b32.xlu0 %v2443, 24
        %v2484 = vpop.permute.xlu0 %2483
        %2485 = vrot.lane.b32.xlu0 %v2448, 24
        %v2486 = vpop.permute.xlu0 %2485
        %2487 = vrot.lane.b32.xlu0 %v2453, 24
        %v2488 = vpop.permute.xlu0 %2487
        %2489 = vrot.lane.b32.xlu0 %v2458, 24
        %v2490 = vpop.permute.xlu0 %2489
        %2491 = vrot.lane.b32.xlu0 %v2463, 24
        %v2492 = vpop.permute.xlu0 %2491
        %2493 = vrot.lane.b32.xlu0 %v2468, 24
        %v2494 = vpop.permute.xlu0 %2493
        %vm2503 = vcmask 261312
        %2504 = vst.msk [vmem:[#allocation2] sm:$0xff] %vm2503, %v2480
        %2505 = vst.msk [vmem:[#allocation2 + $0x8] sm:$0xff] %vm2503, %v2482
        %2506 = vst.msk [vmem:[#allocation2 + $0x10] sm:$0xff] %vm2503, %v2484
        %2507 = vst.msk [vmem:[#allocation2 + $0x18] sm:$0xff] %vm2503, %v2486
        %2508 = vst.msk [vmem:[#allocation2 + $0x20] sm:$0xff] %vm2503, %v2488
        %2509 = vst.msk [vmem:[#allocation2 + $0x28] sm:$0xff] %vm2503, %v2490
        %2510 = vst.msk [vmem:[#allocation2 + $0x30] sm:$0xff] %vm2503, %v2492
        %2511 = vst.msk [vmem:[#allocation2 + $0x38] sm:$0xff] %vm2503, %v2494
        %v2512 = vld [vmem:[#allocation2] sm:$0xff]
        %v2513 = vld [vmem:[#allocation2 + $0x8] sm:$0xff]
        %v2514 = vld [vmem:[#allocation2 + $0x10] sm:$0xff]
        %v2515 = vld [vmem:[#allocation2 + $0x18] sm:$0xff]
        %v2516 = vld [vmem:[#allocation2 + $0x20] sm:$0xff]
        %v2517 = vld [vmem:[#allocation2 + $0x28] sm:$0xff]
        %v2518 = vld [vmem:[#allocation2 + $0x30] sm:$0xff]
        %v2519 = vld [vmem:[#allocation2 + $0x38] sm:$0xff]
        %v2520 = vld [vmem:[%s407] sm:$0xff]
        %v2521 = vld [vmem:[%s407 + $0x8] sm:$0xff]
        %v2522 = vld [vmem:[%s407 + $0x10] sm:$0xff]
        %v2523 = vld [vmem:[%s407 + $0x18] sm:$0xff]
        %v2524 = vld [vmem:[%s410] sm:$0x1]
        %v2526 = vlaneseq
        %v2527 = vshrl.u32 %v2526, 7
        %v2528 = vsub.s32 0, %v2527
        %v2529 = vrot.slane %v2524, %v2528
        %v2532 = vsel %vm617, %v2512, 0
        %v2535 = vsel %vm617, %v2513, 0
        %v2538 = vsel %vm617, %v2514, 0
        %v2541 = vsel %vm617, %v2515, 0
        %v2544 = vsel %vm617, %v2516, 0
        %v2547 = vsel %vm617, %v2517, 0
        %v2550 = vsel %vm617, %v2518, 0
        %v2553 = vsel %vm617, %v2519, 0
        %2555 = vmatprep.subr.mxu0 0.0
        %2556 = vmatpush1.msra.mxu0 0.0
        %2557 = vmatprep.subr.mxu0 0.0
        %2558 = vmatpush1.msra.mxu0 0.0
        %2559 = vmatprep.subr.mxu0 0.0
        %2560 = vmatpush1.msra.mxu0 0.0
        %2561 = vmatprep.subr.mxu0 0.0
        %2562 = vmatpush1.msra.mxu0 0.0
        %2563 = vmatprep.subr.mxu0 0.0
        %2564 = vmatpush1.msra.mxu0 0.0
        %2565 = vmatprep.subr.mxu0 0.0
        %2566 = vmatpush1.msra.mxu0 0.0
        %2567 = vmatprep.subr.mxu0 0.0
        %2568 = vmatpush1.msra.mxu0 0.0
        %2569 = vmatprep.subr.mxu0 0.0
        %2570 = vmatpush1.msra.mxu0 0.0
        %2571 = vmatprep.subr.mxu0 0.0
        %2572 = vmatpush1.msra.mxu0 0.0
        %2573 = vmatprep.subr.mxu0 0.0
        %2574 = vmatpush1.msra.mxu0 0.0
        %2575 = vmatprep.subr.mxu0 0.0
        %2576 = vmatpush1.msra.mxu0 0.0
        %2577 = vmatprep.subr.mxu0 0.0
        %2578 = vmatpush1.msra.mxu0 0.0
        %2579 = vmatprep.subr.mxu0 0.0
        %2580 = vmatpush1.msra.mxu0 %v2523
        %2581 = vmatprep.subr.mxu0 0.0
        %2582 = vmatpush1.msra.mxu0 %v2522
        %2583 = vmatprep.subr.mxu0 0.0
        %2584 = vmatpush1.msra.mxu0 %v2521
        %2585 = vmatprep.subr.mxu0 0.0
        %2586 = vmatpush1.msra.mxu0 %v2520
        %2587 = vmatprep.subr.mxu0 0.0
        %2588 = vmatpush2.msra.mxu0 0.0
        %2589 = vmatprep.subr.mxu0 0.0
        %2590 = vmatpush2.msra.mxu0 0.0
        %2591 = vmatprep.subr.mxu0 0.0
        %2592 = vmatpush2.msra.mxu0 0.0
        %2593 = vmatprep.subr.mxu0 0.0
        %2594 = vmatpush2.msra.mxu0 0.0
        %2595 = vmatprep.subr.mxu0 0.0
        %2596 = vmatpush2.msra.mxu0 0.0
        %2597 = vmatprep.subr.mxu0 0.0
        %2598 = vmatpush2.msra.mxu0 0.0
        %2599 = vmatprep.subr.mxu0 0.0
        %2600 = vmatpush2.msra.mxu0 0.0
        %2601 = vmatprep.subr.mxu0 0.0
        %2602 = vmatpush2.msra.mxu0 0.0
        %2603 = vmatprep.subr.mxu0 0.0
        %2604 = vmatpush2.msra.mxu0 0.0
        %2605 = vmatprep.subr.mxu0 0.0
        %2606 = vmatpush2.msra.mxu0 0.0
        %2607 = vmatprep.subr.mxu0 0.0
        %2608 = vmatpush2.msra.mxu0 0.0
        %2609 = vmatprep.subr.mxu0 0.0
        %2610 = vmatpush2.msra.mxu0 0.0
        %2611 = vmatprep.subr.mxu0 0.0
        %2612 = vmatpush2.msra.mxu0 0.0
        %2613 = vmatprep.subr.mxu0 0.0
        %2614 = vmatpush2.msra.mxu0 0.0
        %2615 = vmatprep.subr.mxu0 0.0
        %2616 = vmatpush2.msra.mxu0 0.0
        %2617 = vmatprep.subr.mxu0 0.0
        %2618 = vmatpush2.msra.mxu0 0.0
        %2619 = vmatprep.mubr.f32.mxu0 0.0
        %2620 = vmatmul.mubr.f32.gmra.mxu0 %v2532
        %v2621 = vpop.f32.mrf.mxu0
        %v2622 = vadd.f32 %v2529, %v2621
        %v2623 = vpop.f32.mrf.mxu0
        %2624 = vmatprep.mubr.f32.mxu0 0.0
        %2625 = vmatmul.mubr.f32.gmra.mxu0 %v2535
        %v2626 = vpop.f32.mrf.mxu0
        %v2627 = vadd.f32 %v2529, %v2626
        %v2628 = vpop.f32.mrf.mxu0
        %2629 = vmatprep.mubr.f32.mxu0 0.0
        %2630 = vmatmul.mubr.f32.gmra.mxu0 %v2538
        %v2631 = vpop.f32.mrf.mxu0
        %v2632 = vadd.f32 %v2529, %v2631
        %v2633 = vpop.f32.mrf.mxu0
        %2634 = vmatprep.mubr.f32.mxu0 0.0
        %2635 = vmatmul.mubr.f32.gmra.mxu0 %v2541
        %v2636 = vpop.f32.mrf.mxu0
        %v2637 = vadd.f32 %v2529, %v2636
        %v2638 = vpop.f32.mrf.mxu0
        %2639 = vmatprep.mubr.f32.mxu0 0.0
        %2640 = vmatmul.mubr.f32.gmra.mxu0 %v2544
        %v2641 = vpop.f32.mrf.mxu0
        %v2642 = vadd.f32 %v2529, %v2641
        %v2643 = vpop.f32.mrf.mxu0
        %2644 = vmatprep.mubr.f32.mxu0 0.0
        %2645 = vmatmul.mubr.f32.gmra.mxu0 %v2547
        %v2646 = vpop.f32.mrf.mxu0
        %v2647 = vadd.f32 %v2529, %v2646
        %v2648 = vpop.f32.mrf.mxu0
        %2649 = vmatprep.mubr.f32.mxu0 0.0
        %2650 = vmatmul.mubr.f32.gmra.mxu0 %v2550
        %v2651 = vpop.f32.mrf.mxu0
        %v2652 = vadd.f32 %v2529, %v2651
        %v2653 = vpop.f32.mrf.mxu0
        %2654 = vmatprep.mubr.f32.mxu0 0.0
        %2655 = vmatmul.mubr.f32.gmra.mxu0 %v2553
        %v2656 = vpop.f32.mrf.mxu0
        %v2657 = vadd.f32 %v2529, %v2656
        %v2658 = vpop.f32.mrf.mxu0
        %2659 = vdwg.mxu0
        %v2660 = vadd.f32 %v2622, %v598
        %v2661 = vadd.f32 %v2627, %v599
        %v2662 = vadd.f32 %v2632, %v600
        %v2663 = vadd.f32 %v2637, %v601
        %v2664 = vadd.f32 %v2642, %v602
        %v2665 = vadd.f32 %v2647, %v603
        %v2666 = vadd.f32 %v2652, %v604
        %v2667 = vadd.f32 %v2657, %v605
        %v2668 = vld [vmem:[%s415] sm:$0xff]
        %v2669 = vld [vmem:[%s415 + $0x8] sm:$0xff]
        %v2670 = vld [vmem:[%s415 + $0x10] sm:$0xff]
        %v2671 = vld [vmem:[%s415 + $0x18] sm:$0xff]
        %v2673 = vsel %vm617, %v2660, 0
        %v2676 = vsel %vm617, %v2661, 0
        %v2679 = vsel %vm617, %v2662, 0
        %v2682 = vsel %vm617, %v2663, 0
        %v2685 = vsel %vm617, %v2664, 0
        %v2688 = vsel %vm617, %v2665, 0
        %v2691 = vsel %vm617, %v2666, 0
        %v2694 = vsel %vm617, %v2667, 0
        %2696 = vmatprep.subr.mxu0 0.0
        %2697 = vmatpush1.msra.mxu0 0.0
        %2698 = vmatprep.subr.mxu0 0.0
        %2699 = vmatpush1.msra.mxu0 0.0
        %2700 = vmatprep.subr.mxu0 0.0
        %2701 = vmatpush1.msra.mxu0 0.0
        %2702 = vmatprep.subr.mxu0 0.0
        %2703 = vmatpush1.msra.mxu0 0.0
        %2704 = vmatprep.subr.mxu0 0.0
        %2705 = vmatpush1.msra.mxu0 0.0
        %2706 = vmatprep.subr.mxu0 0.0
        %2707 = vmatpush1.msra.mxu0 0.0
        %2708 = vmatprep.subr.mxu0 0.0
        %2709 = vmatpush1.msra.mxu0 0.0
        %2710 = vmatprep.subr.mxu0 0.0
        %2711 = vmatpush1.msra.mxu0 0.0
        %2712 = vmatprep.subr.mxu0 0.0
        %2713 = vmatpush1.msra.mxu0 0.0
        %2714 = vmatprep.subr.mxu0 0.0
        %2715 = vmatpush1.msra.mxu0 0.0
        %2716 = vmatprep.subr.mxu0 0.0
        %2717 = vmatpush1.msra.mxu0 0.0
        %2718 = vmatprep.subr.mxu0 0.0
        %2719 = vmatpush1.msra.mxu0 0.0
        %2720 = vmatprep.subr.mxu0 0.0
        %2721 = vmatpush1.msra.mxu0 %v2671
        %2722 = vmatprep.subr.mxu0 0.0
        %2723 = vmatpush1.msra.mxu0 %v2670
        %2724 = vmatprep.subr.mxu0 0.0
        %2725 = vmatpush1.msra.mxu0 %v2669
        %2726 = vmatprep.subr.mxu0 0.0
        %2727 = vmatpush1.msra.mxu0 %v2668
        %2728 = vmatprep.subr.mxu0 0.0
        %2729 = vmatpush2.msra.mxu0 0.0
        %2730 = vmatprep.subr.mxu0 0.0
        %2731 = vmatpush2.msra.mxu0 0.0
        %2732 = vmatprep.subr.mxu0 0.0
        %2733 = vmatpush2.msra.mxu0 0.0
        %2734 = vmatprep.subr.mxu0 0.0
        %2735 = vmatpush2.msra.mxu0 0.0
        %2736 = vmatprep.subr.mxu0 0.0
        %2737 = vmatpush2.msra.mxu0 0.0
        %2738 = vmatprep.subr.mxu0 0.0
        %2739 = vmatpush2.msra.mxu0 0.0
        %2740 = vmatprep.subr.mxu0 0.0
        %2741 = vmatpush2.msra.mxu0 0.0
        %2742 = vmatprep.subr.mxu0 0.0
        %2743 = vmatpush2.msra.mxu0 0.0
        %2744 = vmatprep.subr.mxu0 0.0
        %2745 = vmatpush2.msra.mxu0 0.0
        %2746 = vmatprep.subr.mxu0 0.0
        %2747 = vmatpush2.msra.mxu0 0.0
        %2748 = vmatprep.subr.mxu0 0.0
        %2749 = vmatpush2.msra.mxu0 0.0
        %2750 = vmatprep.subr.mxu0 0.0
        %2751 = vmatpush2.msra.mxu0 0.0
        %2752 = vmatprep.subr.mxu0 0.0
        %2753 = vmatpush2.msra.mxu0 0.0
        %2754 = vmatprep.subr.mxu0 0.0
        %2755 = vmatpush2.msra.mxu0 0.0
        %2756 = vmatprep.subr.mxu0 0.0
        %2757 = vmatpush2.msra.mxu0 0.0
        %2758 = vmatprep.subr.mxu0 0.0
        %2759 = vmatpush2.msra.mxu0 0.0
        %2760 = vmatprep.mubr.f32.mxu0 0.0
        %2761 = vmatmul.mubr.f32.gmra.mxu0 %v2673
        %v2762 = vpop.f32.mrf.mxu0
        %v2763 = vadd.f32 0.0, %v2762
        %v2764 = vpop.f32.mrf.mxu0
        %2765 = vmatprep.mubr.f32.mxu0 0.0
        %2766 = vmatmul.mubr.f32.gmra.mxu0 %v2676
        %v2767 = vpop.f32.mrf.mxu0
        %v2768 = vadd.f32 0.0, %v2767
        %v2769 = vpop.f32.mrf.mxu0
        %2770 = vmatprep.mubr.f32.mxu0 0.0
        %2771 = vmatmul.mubr.f32.gmra.mxu0 %v2679
        %v2772 = vpop.f32.mrf.mxu0
        %v2773 = vadd.f32 0.0, %v2772
        %v2774 = vpop.f32.mrf.mxu0
        %2775 = vmatprep.mubr.f32.mxu0 0.0
        %2776 = vmatmul.mubr.f32.gmra.mxu0 %v2682
        %v2777 = vpop.f32.mrf.mxu0
        %v2778 = vadd.f32 0.0, %v2777
        %v2779 = vpop.f32.mrf.mxu0
        %2780 = vmatprep.mubr.f32.mxu0 0.0
        %2781 = vmatmul.mubr.f32.gmra.mxu0 %v2685
        %v2782 = vpop.f32.mrf.mxu0
        %v2783 = vadd.f32 0.0, %v2782
        %v2784 = vpop.f32.mrf.mxu0
        %2785 = vmatprep.mubr.f32.mxu0 0.0
        %2786 = vmatmul.mubr.f32.gmra.mxu0 %v2688
        %v2787 = vpop.f32.mrf.mxu0
        %v2788 = vadd.f32 0.0, %v2787
        %v2789 = vpop.f32.mrf.mxu0
        %2790 = vmatprep.mubr.f32.mxu0 0.0
        %2791 = vmatmul.mubr.f32.gmra.mxu0 %v2691
        %v2792 = vpop.f32.mrf.mxu0
        %v2793 = vadd.f32 0.0, %v2792
        %v2794 = vpop.f32.mrf.mxu0
        %2795 = vmatprep.mubr.f32.mxu0 0.0
        %2796 = vmatmul.mubr.f32.gmra.mxu0 %v2694
        %v2797 = vpop.f32.mrf.mxu0
        %v2798 = vadd.f32 0.0, %v2797
        %v2799 = vpop.f32.mrf.mxu0
        %2800 = vdwg.mxu0
        %v2801 = vadd.f32 %v2660, %v2763
        %v2802 = vadd.f32 %v2661, %v2768
        %v2803 = vadd.f32 %v2662, %v2773
        %v2804 = vadd.f32 %v2663, %v2778
        %v2805 = vadd.f32 %v2664, %v2783
        %v2806 = vadd.f32 %v2665, %v2788
        %v2807 = vadd.f32 %v2666, %v2793
        %v2808 = vadd.f32 %v2667, %v2798
        %2809 = vst.msk [vmem:[%s420] sm:$0xff] %vm617, %v2801
        %2810 = vst.msk [vmem:[%s420 + $0x8] sm:$0xff] %vm617, %v2802
        %2811 = vst.msk [vmem:[%s420 + $0x10] sm:$0xff] %vm617, %v2803
        %2812 = vst.msk [vmem:[%s420 + $0x18] sm:$0xff] %vm617, %v2804
        %2813 = vst.msk [vmem:[%s420 + $0x20] sm:$0xff] %vm617, %v2805
        %2814 = vst.msk [vmem:[%s420 + $0x28] sm:$0xff] %vm617, %v2806
        %2815 = vst.msk [vmem:[%s420 + $0x30] sm:$0xff] %vm617, %v2807
        %2816 = vst.msk [vmem:[%s420 + $0x38] sm:$0xff] %vm617, %v2808
        %p2817 = scmp.lt.s32.totalorder %s24, 1
        %s2818 = scalar_select %p2817, %s24, 1
        %s2819 = smul.addr %s2818, 8
        %s2820 = smul.addr %s2819, 8
        %s2821 = scalar_lea.vmem %s8, %s2820
        // Predicated region
        $region61: #{tpu_custom_call.1} parent=51 // pred_check
          %p2822 = pneg %p248
        $region62: #{tpu_custom_call.1} parent=51 // pred_check_branch
          %2824 = sbr.rel (%p2822) target = $region64
        $region63: #{tpu_custom_call.1} parent=51 // pred_region
          _
        $region64: #{tpu_custom_call.1} parent=51 // pred_fallthru
          _
      $region52: #{tpu_custom_call.1} parent=5 // pred_fallthru
        _
      %p2825 = scmp.le.s32.totalorder 2, %s15
      // Predicated region
      $region65: #{tpu_custom_call.1} parent=5 // pred_check
        %p2826 = pneg %p2825
      $region66: #{tpu_custom_call.1} parent=5 // pred_check_branch
        %2828 = sbr.rel (%p2826) target = $region68
      $region67: #{tpu_custom_call.1} parent=5 // pred_region
        %s2829 = ssub.s32 %s15, 2
        // Predicated region
        $region69: #{tpu_custom_call.1} parent=67 // pred_check
          %p2830 = pneg %p254
        $region70: #{tpu_custom_call.1} parent=67 // pred_check_branch
          %2832 = sbr.rel (%p2830) target = $region72
        $region71: #{tpu_custom_call.1} parent=67 // pred_region
          %p2833 = scmp.lt.s32.totalorder %s26, 1
          %s2834 = scalar_select %p2833, %s26, 1
          %s2835 = smul.addr %s2834, 8
          %s2836 = smul.addr %s2835, 8
          %s2837 = scalar_lea.vmem %s8, %s2836
        $region72: #{tpu_custom_call.1} parent=67 // pred_fallthru
          _
      $region68: #{tpu_custom_call.1} parent=5 // pred_fallthru
        _
    $region6: #{tpu_custom_call.1} parent=1 // loop_footer
      %s19 = sadd.s32 1, %s15
    $region7: #{tpu_custom_call.1} parent=1 // loop_footer_branch
      %14 = sbr.rel target = $region3
    $region8: #{tpu_custom_call.1} parent=1 // loop_exit
      _
    %2838 = vsyncpa [#allocation4], 1
    %s2839 = scalar_lea.sflag [#allocation4], 1
    %2840 = vsyncpa %s2839, 1

</llo_original>
